<compile_context>
chip_gen: v6e
topology: v6e:2x2x1
jax: 0.10.0
libtpu: 0.0.40
codegen_flags: <defaults>
</compile_context>

<pallas_src>
import jax
import jax.numpy as jnp
import numpy as np
from jax.experimental import pallas as pl
from jax.experimental.pallas import tpu as pltpu


def _round_up(x, m):
    return (x + m - 1) // m * m


def _pick_time_chunk(T, b_blk, g, hp, budget_bytes=40 * 1024 * 1024, max_ct=64):
    """Largest CT (multiple of 8, <= max_ct) whose pipelined buffers fit the VMEM budget."""
    cap = max(8, min(max_ct, _round_up(T, 8)))
    ct = 8
    for cand in range(8, cap + 1, 8):
        stream = 2 * cand * b_blk * g * 2        # gin double buffer (bf16)
        stream += 2 * b_blk * cand * hp * 2      # output double buffer (bf16)
        fixed = hp * g * 2                       # resident W_hh (bf16, single buffer)
        fixed += 3 * b_blk * hp * 4              # h scratch + final hidden + slack (f32)
        if stream + fixed <= budget_bytes:
            ct = cand
        else:
            break
    return ct


def _gru_kernel(gin_ref, whh_ref, bhn_ref, out_ref, hid_ref, h_scr):
    """One grid step == CT timesteps of one batch block. Hidden carried in VMEM scratch.

    gin_ref : (CT, Bblk, 3*Hp) bf16  precomputed input projection (+ folded r/z biases)
    whh_ref : (Hp, 3*Hp)       bf16  fused recurrent weights, gate layout [r | z | n]
    bhn_ref : (1, Hp)          f32   b_hn (n-gate recurrent bias)
    out_ref : (Bblk, CT, Hp)   bf16  per-step GRU output (batch-major, lane-dense)
    hid_ref : (1, Bblk, Hp)    f32   final hidden (resident block, written once)
    h_scr   : (Bblk, Hp)       f32   carried hidden state
    """
    t = pl.program_id(1)                              # time-chunk index (axis 1)
    ct = gin_ref.shape[0]
    bb, hp = h_scr.shape

    @pl.when(t == 0)
    def _():
        h_scr[...] = jnp.zeros_like(h_scr)            # GRU default h0 = 0

    # Hoisted out of the unrolled loop (JAX does not CSE broadcast_in_dim / ref loads).
    whh = whh_ref[...]                                # (Hp, 3*Hp) bf16
    bhn = jnp.broadcast_to(bhn_ref[...], (bb, hp))    # (Bblk, Hp) f32

    # TODO(synk): interleave two independent batch sub-blocks per timestep to hide the
    # serial MXU -> EUP -> VALU latency when B is small.
    def step(i, carry):
        h = h_scr[...]                                # (Bblk, Hp) f32
        g = gin_ref[i]                                # (Bblk, 3*Hp) bf16
        # One fused bf16 MXU matmul for all three hidden-gate projections (f32 acc).
        hh = jnp.dot(h.astype(jnp.bfloat16), whh,
                     preferred_element_type=jnp.float32)          # (Bblk, 3*Hp) f32
        r = jax.nn.sigmoid(g[:, :hp] + hh[:, :hp])
        z = jax.nn.sigmoid(g[:, hp:2 * hp] + hh[:, hp:2 * hp])
        n = jnp.tanh(g[:, 2 * hp:] + r * (hh[:, 2 * hp:] + bhn))
        h_new = n + z * (h - n)                       # == (1-z)*n + z*h, one fewer mul
        h_scr[...] = h_new
        out_ref[:, i, :] = h_new.astype(out_ref.dtype)
        return carry

    jax.lax.fori_loop(0, ct, step, 0, unroll=True)

    @pl.when(t == pl.num_programs(1) - 1)
    def _():
        hid_ref[0] = h_scr[...].astype(hid_ref.dtype)


@jax.jit
def encoder_rnn_forward(token_ids, emb_table, w_ih, w_hh, b_ih, b_hh):
    """token_ids: (B, T) int32. Returns (output (B,T,H) f32, hidden (1,B,H) f32).

    Parameters (PyTorch GRU semantics, gate order r,z,n, weights pre-transposed):
      emb_table : (V, E); w_ih : (3, E, H); w_hh : (3, H, H); b_ih, b_hh : (3, H)
    """
    B, T = token_ids.shape
    V, E = emb_table.shape
    H = w_hh.shape[-1]
    Hp = _round_up(H, 128)                # pad each gate to a lane-dense 128 multiple
    G = 3 * Hp

    # ---- fused / padded parameter layout -------------------------------------
    def pad_cols(w):                                                 # (X,H)->(X,Hp)
        return jnp.pad(w, ((0, 0), (0, Hp - H)))

    def pad_vec(v):
        return jnp.pad(v, (0, Hp - H))

    w_ih_f = jnp.concatenate([pad_cols(w_ih[k]) for k in range(3)], axis=1)   # (E, G)
    w_hh_f = jnp.concatenate([pad_cols(w_hh[k]) for k in range(3)], axis=1)   # (H, G)
    w_hh_f = jnp.pad(w_hh_f, ((0, Hp - H), (0, 0))).astype(jnp.bfloat16)      # (Hp, G)

    # Biases folded into the input projection: r,z get b_i*+b_h*, n gets b_in only
    # (b_hn must stay inside r * (h W_hn + b_hn)).
    b_gin = jnp.concatenate([pad_vec(b_ih[0] + b_hh[0]),
                             pad_vec(b_ih[1] + b_hh[1]),
                             pad_vec(b_ih[2])])                               # (G,)
    b_hn = pad_vec(b_hh[2])[None, :]                                          # (1, Hp)

    # ---- input projection hoisted out of the recurrence (XLA glue) -----------
    if V <= T * B:
        # Small vocab: per-token gate table + gather beats the (T*B,E)x(E,G) GEMM.
        tok_gates = jnp.dot(emb_table, w_ih_f,
                            preferred_element_type=jnp.float32) + b_gin       # (V, G)
        gin = jnp.take(tok_gates, token_ids.T, axis=0)                        # (T, B, G)
    else:
        x_tm = jnp.take(emb_table, token_ids.T, axis=0)                       # (T, B, E)
        gin = jnp.dot(x_tm.reshape(T * B, E).astype(jnp.bfloat16),
                      w_ih_f.astype(jnp.bfloat16),
                      preferred_element_type=jnp.float32).reshape(T, B, G) + b_gin
    gin = gin.astype(jnp.bfloat16)                                            # (T, B, G)

    # ---- batch split (2 TCs on v7x) and VMEM-budgeted time chunking ----------
    NB = 2 if B % 16 == 0 else 1          # keep Bblk a multiple of 8
    Bblk = B // NB
    CT = _pick_time_chunk(T, Bblk, G, Hp)
    T_pad = _round_up(T, CT)
    if T_pad > T:
        # Identity-pad extra timesteps: z-gate saturated (sigmoid -> 1.0) => h' = h.
        pad0 = jnp.zeros((T_pad - T, B, Hp), gin.dtype)
        padz = jnp.full((T_pad - T, B, Hp), 1e4, gin.dtype)
        gin = jnp.concatenate([gin, jnp.concatenate([pad0, padz, pad0], axis=-1)],
                              axis=0)

    # ---- recurrent Pallas kernel ----------------------------------------------
    grid_spec = pltpu.PrefetchScalarGridSpec(
        num_scalar_prefetch=0,
        grid=(NB, T_pad // CT),
        in_specs=[
            pl.BlockSpec((CT, Bblk, G), lambda b, c: (c, b, 0)),              # gin stream
            pl.BlockSpec((Hp, G), lambda b, c: (0, 0),
                         pipeline_mode=pl.Buffered(1)),                       # W_hh resident
            pl.BlockSpec((1, Hp), lambda b, c: (0, 0),
                         pipeline_mode=pl.Buffered(1)),                       # b_hn resident
        ],
        out_specs=[
            pl.BlockSpec((Bblk, CT, Hp), lambda b, c: (b, c, 0)),             # output stream
            pl.BlockSpec((1, Bblk, Hp), lambda b, c: (0, b, 0),
                         pipeline_mode=pl.Buffered(1)),                       # final hidden
        ],
        scratch_shapes=[pltpu.VMEM((Bblk, Hp), jnp.float32)],
    )

    out_bm, hidden = pl.pallas_call(
        _gru_kernel,
        grid_spec=grid_spec,
        out_shape=(
            jax.ShapeDtypeStruct((B, T_pad, Hp), jnp.bfloat16),
            jax.ShapeDtypeStruct((1, B, Hp), jnp.float32),
        ),
        compiler_params=pltpu.CompilerParams(
            dimension_semantics=("parallel", "arbitrary"),   # batch parallel, time serial
            vmem_limit_bytes=48 * 1024 * 1024,
        ),
    )(gin, w_hh_f, b_hn)

    # Already batch_first — no XLA transpose needed; strip padding, restore f32.
    output = out_bm[:, :T, :H].astype(jnp.float32)
    return output, hidden[:, :, :H]


def _reference_forward(token_ids, emb_table, w_ih, w_hh, b_ih, b_hh):
    """Pure-JAX f32 reference (same math, unfused/unpadded) for correctness checks."""
    B, T = token_ids.shape
    H = w_hh.shape[-1]
    x = jnp.take(emb_table, token_ids, axis=0)               # (B, T, E)

    def step(h, x_t):
        def gi(k):
            return x_t @ w_ih[k] + b_ih[k]

        def gh(k):
            return h @ w_hh[k] + b_hh[k]

        r = jax.nn.sigmoid(gi(0) + gh(0))
        z = jax.nn.sigmoid(gi(1) + gh(1))
        n = jnp.tanh(gi(2) + r * gh(2))
        h_new = (1.0 - z) * n + z * h
        return h_new, h_new

    h0 = jnp.zeros((B, H), jnp.float32)
    h_last, outs = jax.lax.scan(step, h0, jnp.transpose(x, (1, 0, 2)))
    return jnp.transpose(outs, (1, 0, 2)), h_last[None]


if __name__ == "__main__":
    # Small synthetic shapes consistent with the module.
    VOCAB, EMBED, HIDDEN = 20, 32, 32
    BATCH, SEQ = 8, 8

    key = jax.random.PRNGKey(0)
    k_emb, k_wih, k_whh, k_bih, k_bhh, k_ids = jax.random.split(key, 6)

    # nn.Embedding default init: N(0, 1).
    emb_table = jax.random.normal(k_emb, (VOCAB, EMBED), jnp.float32)

    # nn.GRU default init: U(-1/sqrt(H), 1/sqrt(H)); weights stored transposed and
    # stacked per gate (order r, z, n): w_ih[k] is (E,H), w_hh[k] is (H,H).
    bound = 1.0 / np.sqrt(HIDDEN)
    w_ih = jax.random.uniform(k_wih, (3, EMBED, HIDDEN), jnp.float32, -bound, bound)
    w_hh = jax.random.uniform(k_whh, (3, HIDDEN, HIDDEN), jnp.float32, -bound, bound)
    b_ih = jax.random.uniform(k_bih, (3, HIDDEN), jnp.float32, -bound, bound)
    b_hh = jax.random.uniform(k_bhh, (3, HIDDEN), jnp.float32, -bound, bound)

    token_ids = jax.random.randint(k_ids, (BATCH, SEQ), 0, VOCAB, jnp.int32)

    output, hidden = encoder_rnn_forward(token_ids, emb_table, w_ih, w_hh, b_ih, b_hh)
    jax.block_until_ready((output, hidden))

    assert output.shape == (BATCH, SEQ, HIDDEN)
    assert hidden.shape == (1, BATCH, HIDDEN)
    assert output.dtype == jnp.float32 and hidden.dtype == jnp.float32

    ref_out, ref_hid = _reference_forward(token_ids, emb_table, w_ih, w_hh, b_ih, b_hh)
    # bf16 MXU operands + bf16 output stream => ~3 decimal digits; tolerance loosened
    # accordingly (f32 accumulation / f32 hidden carry keeps the recurrence stable).
    np.testing.assert_allclose(np.asarray(output), np.asarray(ref_out), atol=2e-2, rtol=2e-2)
    np.testing.assert_allclose(np.asarray(hidden), np.asarray(ref_hid), atol=2e-2, rtol=2e-2)

    print("KERNEL_OK")
</pallas_src>

<mosaic_0001>
module attributes {stable_mosaic.version = 11 : i64} {
  func.func @_gru_kernel(%arg0: i32, %arg1: i32, %arg2: memref<8x8x384xbf16, #tpu.memory_space<vmem>>, %arg3: memref<128x384xbf16, #tpu.memory_space<vmem>>, %arg4: memref<1x128xf32, #tpu.memory_space<vmem>>, %arg5: memref<8x8x128xbf16, #tpu.memory_space<vmem>>, %arg6: memref<1x8x128xf32, #tpu.memory_space<vmem>>, %arg7: memref<8x128xf32, #tpu.memory_space<vmem>>) attributes {dimension_semantics = [#tpu.dimension_semantics<parallel>, #tpu.dimension_semantics<arbitrary>], iteration_bounds = array<i64: 1, 1>, scalar_prefetch = 0 : i64, scratch_operands = 1 : i64, tpu.core_type = #tpu.core_type<tc>, window_params = [{transform_indices = @transform_0, window_bounds = array<i64: 8, 8, 384>}, {pipeline_mode = #tpu.pipeline_mode<synchronous>, transform_indices = @transform_1, window_bounds = array<i64: 128, 384>}, {pipeline_mode = #tpu.pipeline_mode<synchronous>, transform_indices = @transform_2, window_bounds = array<i64: 1, 128>}, {transform_indices = @transform_3, window_bounds = array<i64: 8, 8, 128>}, {pipeline_mode = #tpu.pipeline_mode<synchronous>, transform_indices = @transform_4, window_bounds = array<i64: 1, 8, 128>}]} {
    %c0_i32 = arith.constant 0 : i32
    %0 = arith.cmpi eq, %arg1, %c0_i32 : i32
    %1 = arith.extui %0 : i1 to i32
    %c0_i32_0 = arith.constant 0 : i32
    %2 = arith.cmpi ne, %1, %c0_i32_0 : i32
    scf.if %2 {
      %cst_94 = arith.constant 0.000000e+00 : f32
      %330 = vector.broadcast %cst_94 : f32 to vector<8x128xf32>
      %c0_95 = arith.constant 0 : index
      %c0_96 = arith.constant 0 : index
      %331 = vector.load %arg7[%c0_95, %c0_96] : memref<8x128xf32, #tpu.memory_space<vmem>>, vector<8x128xf32>
      tpu.vector_store %arg7[%c0_95, %c0_96], %330 {strides = array<i32>} : memref<8x128xf32, #tpu.memory_space<vmem>>, vector<8x128xf32>,
    } else {
    }
    %c0 = arith.constant 0 : index
    %c0_1 = arith.constant 0 : index
    %3 = vector.load %arg3[%c0, %c0_1] : memref<128x384xbf16, #tpu.memory_space<vmem>>, vector<128x384xbf16>
    %c0_2 = arith.constant 0 : index
    %c0_3 = arith.constant 0 : index
    %4 = vector.load %arg4[%c0_2, %c0_3] : memref<1x128xf32, #tpu.memory_space<vmem>>, vector<1x128xf32>
    %5 = vector.shape_cast %4 : vector<1x128xf32> to vector<1x128xf32>
    %6 = vector.broadcast %5 : vector<1x128xf32> to vector<8x128xf32>
    %c0_i32_4 = arith.constant 0 : i32
    %c0_5 = arith.constant 0 : index
    %c0_6 = arith.constant 0 : index
    %7 = vector.load %arg7[%c0_5, %c0_6] : memref<8x128xf32, #tpu.memory_space<vmem>>, vector<8x128xf32>
    %8 = arith.index_cast %c0_i32_4 : i32 to index
    %c0_7 = arith.constant 0 : index
    %c0_8 = arith.constant 0 : index
    %9 = vector.load %arg2[%8, %c0_7, %c0_8] : memref<8x8x384xbf16, #tpu.memory_space<vmem>>, vector<1x8x384xbf16>
    %10 = vector.shape_cast %9 : vector<1x8x384xbf16> to vector<8x384xbf16>
    %11 = arith.truncf %7 : vector<8x128xf32> to vector<8x128xbf16>
    %cst = arith.constant dense<0.000000e+00> : vector<8x384xf32>
    %12 = tpu.matmul %11, %3, %cst {dimension_numbers = #tpu.dot_dimension_numbers<[1], [0], [0], [1], [0, 0, 1, 1], [], []>} : vector<8x128xbf16>, vector<128x384xbf16>, vector<8x384xf32> -> vector<8x384xf32>
    %13 = vector.extract_strided_slice %10 {offsets = [0, 0], sizes = [8, 128], strides = [1, 1]} : vector<8x384xbf16> to vector<8x128xbf16>
    %14 = vector.extract_strided_slice %12 {offsets = [0, 0], sizes = [8, 128], strides = [1, 1]} : vector<8x384xf32> to vector<8x128xf32>
    %15 = arith.extf %13 : vector<8x128xbf16> to vector<8x128xf32>
    %16 = arith.addf %15, %14 : vector<8x128xf32>
    %17 = arith.negf %16 : vector<8x128xf32>
    %18 = math.exp %17 : vector<8x128xf32>
    %cst_9 = arith.constant 1.000000e+00 : f32
    %19 = vector.broadcast %cst_9 : f32 to vector<8x128xf32>
    %20 = arith.addf %19, %18 : vector<8x128xf32>
    %21 = arith.divf %19, %20 : vector<8x128xf32>
    %22 = vector.extract_strided_slice %10 {offsets = [0, 128], sizes = [8, 128], strides = [1, 1]} : vector<8x384xbf16> to vector<8x128xbf16>
    %23 = vector.extract_strided_slice %12 {offsets = [0, 128], sizes = [8, 128], strides = [1, 1]} : vector<8x384xf32> to vector<8x128xf32>
    %24 = arith.extf %22 : vector<8x128xbf16> to vector<8x128xf32>
    %25 = arith.addf %24, %23 : vector<8x128xf32>
    %26 = arith.negf %25 : vector<8x128xf32>
    %27 = math.exp %26 : vector<8x128xf32>
    %cst_10 = arith.constant 1.000000e+00 : f32
    %28 = vector.broadcast %cst_10 : f32 to vector<8x128xf32>
    %29 = arith.addf %28, %27 : vector<8x128xf32>
    %30 = arith.divf %28, %29 : vector<8x128xf32>
    %31 = vector.extract_strided_slice %10 {offsets = [0, 256], sizes = [8, 128], strides = [1, 1]} : vector<8x384xbf16> to vector<8x128xbf16>
    %32 = vector.extract_strided_slice %12 {offsets = [0, 256], sizes = [8, 128], strides = [1, 1]} : vector<8x384xf32> to vector<8x128xf32>
    %33 = arith.addf %32, %6 : vector<8x128xf32>
    %34 = arith.mulf %21, %33 : vector<8x128xf32>
    %35 = arith.extf %31 : vector<8x128xbf16> to vector<8x128xf32>
    %36 = arith.addf %35, %34 : vector<8x128xf32>
    %37 = math.tanh %36 : vector<8x128xf32>
    %38 = arith.subf %7, %37 : vector<8x128xf32>
    %39 = arith.mulf %30, %38 : vector<8x128xf32>
    %40 = arith.addf %37, %39 : vector<8x128xf32>
    %c0_11 = arith.constant 0 : index
    %c0_12 = arith.constant 0 : index
    %41 = vector.load %arg7[%c0_11, %c0_12] : memref<8x128xf32, #tpu.memory_space<vmem>>, vector<8x128xf32>
    tpu.vector_store %arg7[%c0_11, %c0_12], %40 {strides = array<i32>} : memref<8x128xf32, #tpu.memory_space<vmem>>, vector<8x128xf32>,
    %42 = arith.truncf %40 : vector<8x128xf32> to vector<8x128xbf16>
    %c0_13 = arith.constant 0 : index
    %43 = arith.index_cast %c0_i32_4 : i32 to index
    %c0_14 = arith.constant 0 : index
    %44 = vector.load %arg5[%c0_13, %43, %c0_14] : memref<8x8x128xbf16, #tpu.memory_space<vmem>>, vector<8x1x128xbf16>
    %45 = vector.shape_cast %44 : vector<8x1x128xbf16> to vector<8x128xbf16>
    %46 = vector.shape_cast %42 : vector<8x128xbf16> to vector<8x1x128xbf16>
    tpu.vector_store %arg5[%c0_13, %43, %c0_14], %46 {strides = array<i32>} : memref<8x8x128xbf16, #tpu.memory_space<vmem>>, vector<8x1x128xbf16>,
    %c1_i32 = arith.constant 1 : i32
    %c0_15 = arith.constant 0 : index
    %c0_16 = arith.constant 0 : index
    %47 = vector.load %arg7[%c0_15, %c0_16] : memref<8x128xf32, #tpu.memory_space<vmem>>, vector<8x128xf32>
    %48 = arith.index_cast %c1_i32 : i32 to index
    %c0_17 = arith.constant 0 : index
    %c0_18 = arith.constant 0 : index
    %49 = vector.load %arg2[%48, %c0_17, %c0_18] : memref<8x8x384xbf16, #tpu.memory_space<vmem>>, vector<1x8x384xbf16>
    %50 = vector.shape_cast %49 : vector<1x8x384xbf16> to vector<8x384xbf16>
    %51 = arith.truncf %47 : vector<8x128xf32> to vector<8x128xbf16>
    %cst_19 = arith.constant dense<0.000000e+00> : vector<8x384xf32>
    %52 = tpu.matmul %51, %3, %cst_19 {dimension_numbers = #tpu.dot_dimension_numbers<[1], [0], [0], [1], [0, 0, 1, 1], [], []>} : vector<8x128xbf16>, vector<128x384xbf16>, vector<8x384xf32> -> vector<8x384xf32>
    %53 = vector.extract_strided_slice %50 {offsets = [0, 0], sizes = [8, 128], strides = [1, 1]} : vector<8x384xbf16> to vector<8x128xbf16>
    %54 = vector.extract_strided_slice %52 {offsets = [0, 0], sizes = [8, 128], strides = [1, 1]} : vector<8x384xf32> to vector<8x128xf32>
    %55 = arith.extf %53 : vector<8x128xbf16> to vector<8x128xf32>
    %56 = arith.addf %55, %54 : vector<8x128xf32>
    %57 = arith.negf %56 : vector<8x128xf32>
    %58 = math.exp %57 : vector<8x128xf32>
    %cst_20 = arith.constant 1.000000e+00 : f32
    %59 = vector.broadcast %cst_20 : f32 to vector<8x128xf32>
    %60 = arith.addf %59, %58 : vector<8x128xf32>
    %61 = arith.divf %59, %60 : vector<8x128xf32>
    %62 = vector.extract_strided_slice %50 {offsets = [0, 128], sizes = [8, 128], strides = [1, 1]} : vector<8x384xbf16> to vector<8x128xbf16>
    %63 = vector.extract_strided_slice %52 {offsets = [0, 128], sizes = [8, 128], strides = [1, 1]} : vector<8x384xf32> to vector<8x128xf32>
    %64 = arith.extf %62 : vector<8x128xbf16> to vector<8x128xf32>
    %65 = arith.addf %64, %63 : vector<8x128xf32>
    %66 = arith.negf %65 : vector<8x128xf32>
    %67 = math.exp %66 : vector<8x128xf32>
    %cst_21 = arith.constant 1.000000e+00 : f32
    %68 = vector.broadcast %cst_21 : f32 to vector<8x128xf32>
    %69 = arith.addf %68, %67 : vector<8x128xf32>
    %70 = arith.divf %68, %69 : vector<8x128xf32>
    %71 = vector.extract_strided_slice %50 {offsets = [0, 256], sizes = [8, 128], strides = [1, 1]} : vector<8x384xbf16> to vector<8x128xbf16>
    %72 = vector.extract_strided_slice %52 {offsets = [0, 256], sizes = [8, 128], strides = [1, 1]} : vector<8x384xf32> to vector<8x128xf32>
    %73 = arith.addf %72, %6 : vector<8x128xf32>
    %74 = arith.mulf %61, %73 : vector<8x128xf32>
    %75 = arith.extf %71 : vector<8x128xbf16> to vector<8x128xf32>
    %76 = arith.addf %75, %74 : vector<8x128xf32>
    %77 = math.tanh %76 : vector<8x128xf32>
    %78 = arith.subf %47, %77 : vector<8x128xf32>
    %79 = arith.mulf %70, %78 : vector<8x128xf32>
    %80 = arith.addf %77, %79 : vector<8x128xf32>
    %c0_22 = arith.constant 0 : index
    %c0_23 = arith.constant 0 : index
    %81 = vector.load %arg7[%c0_22, %c0_23] : memref<8x128xf32, #tpu.memory_space<vmem>>, vector<8x128xf32>
    tpu.vector_store %arg7[%c0_22, %c0_23], %80 {strides = array<i32>} : memref<8x128xf32, #tpu.memory_space<vmem>>, vector<8x128xf32>,
    %82 = arith.truncf %80 : vector<8x128xf32> to vector<8x128xbf16>
    %c0_24 = arith.constant 0 : index
    %83 = arith.index_cast %c1_i32 : i32 to index
    %c0_25 = arith.constant 0 : index
    %84 = vector.load %arg5[%c0_24, %83, %c0_25] : memref<8x8x128xbf16, #tpu.memory_space<vmem>>, vector<8x1x128xbf16>
    %85 = vector.shape_cast %84 : vector<8x1x128xbf16> to vector<8x128xbf16>
    %86 = vector.shape_cast %82 : vector<8x128xbf16> to vector<8x1x128xbf16>
    tpu.vector_store %arg5[%c0_24, %83, %c0_25], %86 {strides = array<i32>} : memref<8x8x128xbf16, #tpu.memory_space<vmem>>, vector<8x1x128xbf16>,
    %c2_i32 = arith.constant 2 : i32
    %c0_26 = arith.constant 0 : index
    %c0_27 = arith.constant 0 : index
    %87 = vector.load %arg7[%c0_26, %c0_27] : memref<8x128xf32, #tpu.memory_space<vmem>>, vector<8x128xf32>
    %88 = arith.index_cast %c2_i32 : i32 to index
    %c0_28 = arith.constant 0 : index
    %c0_29 = arith.constant 0 : index
    %89 = vector.load %arg2[%88, %c0_28, %c0_29] : memref<8x8x384xbf16, #tpu.memory_space<vmem>>, vector<1x8x384xbf16>
    %90 = vector.shape_cast %89 : vector<1x8x384xbf16> to vector<8x384xbf16>
    %91 = arith.truncf %87 : vector<8x128xf32> to vector<8x128xbf16>
    %cst_30 = arith.constant dense<0.000000e+00> : vector<8x384xf32>
    %92 = tpu.matmul %91, %3, %cst_30 {dimension_numbers = #tpu.dot_dimension_numbers<[1], [0], [0], [1], [0, 0, 1, 1], [], []>} : vector<8x128xbf16>, vector<128x384xbf16>, vector<8x384xf32> -> vector<8x384xf32>
    %93 = vector.extract_strided_slice %90 {offsets = [0, 0], sizes = [8, 128], strides = [1, 1]} : vector<8x384xbf16> to vector<8x128xbf16>
    %94 = vector.extract_strided_slice %92 {offsets = [0, 0], sizes = [8, 128], strides = [1, 1]} : vector<8x384xf32> to vector<8x128xf32>
    %95 = arith.extf %93 : vector<8x128xbf16> to vector<8x128xf32>
    %96 = arith.addf %95, %94 : vector<8x128xf32>
    %97 = arith.negf %96 : vector<8x128xf32>
    %98 = math.exp %97 : vector<8x128xf32>
    %cst_31 = arith.constant 1.000000e+00 : f32
    %99 = vector.broadcast %cst_31 : f32 to vector<8x128xf32>
    %100 = arith.addf %99, %98 : vector<8x128xf32>
    %101 = arith.divf %99, %100 : vector<8x128xf32>
    %102 = vector.extract_strided_slice %90 {offsets = [0, 128], sizes = [8, 128], strides = [1, 1]} : vector<8x384xbf16> to vector<8x128xbf16>
    %103 = vector.extract_strided_slice %92 {offsets = [0, 128], sizes = [8, 128], strides = [1, 1]} : vector<8x384xf32> to vector<8x128xf32>
    %104 = arith.extf %102 : vector<8x128xbf16> to vector<8x128xf32>
    %105 = arith.addf %104, %103 : vector<8x128xf32>
    %106 = arith.negf %105 : vector<8x128xf32>
    %107 = math.exp %106 : vector<8x128xf32>
    %cst_32 = arith.constant 1.000000e+00 : f32
    %108 = vector.broadcast %cst_32 : f32 to vector<8x128xf32>
    %109 = arith.addf %108, %107 : vector<8x128xf32>
    %110 = arith.divf %108, %109 : vector<8x128xf32>
    %111 = vector.extract_strided_slice %90 {offsets = [0, 256], sizes = [8, 128], strides = [1, 1]} : vector<8x384xbf16> to vector<8x128xbf16>
    %112 = vector.extract_strided_slice %92 {offsets = [0, 256], sizes = [8, 128], strides = [1, 1]} : vector<8x384xf32> to vector<8x128xf32>
    %113 = arith.addf %112, %6 : vector<8x128xf32>
    %114 = arith.mulf %101, %113 : vector<8x128xf32>
    %115 = arith.extf %111 : vector<8x128xbf16> to vector<8x128xf32>
    %116 = arith.addf %115, %114 : vector<8x128xf32>
    %117 = math.tanh %116 : vector<8x128xf32>
    %118 = arith.subf %87, %117 : vector<8x128xf32>
    %119 = arith.mulf %110, %118 : vector<8x128xf32>
    %120 = arith.addf %117, %119 : vector<8x128xf32>
    %c0_33 = arith.constant 0 : index
    %c0_34 = arith.constant 0 : index
    %121 = vector.load %arg7[%c0_33, %c0_34] : memref<8x128xf32, #tpu.memory_space<vmem>>, vector<8x128xf32>
    tpu.vector_store %arg7[%c0_33, %c0_34], %120 {strides = array<i32>} : memref<8x128xf32, #tpu.memory_space<vmem>>, vector<8x128xf32>,
    %122 = arith.truncf %120 : vector<8x128xf32> to vector<8x128xbf16>
    %c0_35 = arith.constant 0 : index
    %123 = arith.index_cast %c2_i32 : i32 to index
    %c0_36 = arith.constant 0 : index
    %124 = vector.load %arg5[%c0_35, %123, %c0_36] : memref<8x8x128xbf16, #tpu.memory_space<vmem>>, vector<8x1x128xbf16>
    %125 = vector.shape_cast %124 : vector<8x1x128xbf16> to vector<8x128xbf16>
    %126 = vector.shape_cast %122 : vector<8x128xbf16> to vector<8x1x128xbf16>
    tpu.vector_store %arg5[%c0_35, %123, %c0_36], %126 {strides = array<i32>} : memref<8x8x128xbf16, #tpu.memory_space<vmem>>, vector<8x1x128xbf16>,
    %c3_i32 = arith.constant 3 : i32
    %c0_37 = arith.constant 0 : index
    %c0_38 = arith.constant 0 : index
    %127 = vector.load %arg7[%c0_37, %c0_38] : memref<8x128xf32, #tpu.memory_space<vmem>>, vector<8x128xf32>
    %128 = arith.index_cast %c3_i32 : i32 to index
    %c0_39 = arith.constant 0 : index
    %c0_40 = arith.constant 0 : index
    %129 = vector.load %arg2[%128, %c0_39, %c0_40] : memref<8x8x384xbf16, #tpu.memory_space<vmem>>, vector<1x8x384xbf16>
    %130 = vector.shape_cast %129 : vector<1x8x384xbf16> to vector<8x384xbf16>
    %131 = arith.truncf %127 : vector<8x128xf32> to vector<8x128xbf16>
    %cst_41 = arith.constant dense<0.000000e+00> : vector<8x384xf32>
    %132 = tpu.matmul %131, %3, %cst_41 {dimension_numbers = #tpu.dot_dimension_numbers<[1], [0], [0], [1], [0, 0, 1, 1], [], []>} : vector<8x128xbf16>, vector<128x384xbf16>, vector<8x384xf32> -> vector<8x384xf32>
    %133 = vector.extract_strided_slice %130 {offsets = [0, 0], sizes = [8, 128], strides = [1, 1]} : vector<8x384xbf16> to vector<8x128xbf16>
    %134 = vector.extract_strided_slice %132 {offsets = [0, 0], sizes = [8, 128], strides = [1, 1]} : vector<8x384xf32> to vector<8x128xf32>
    %135 = arith.extf %133 : vector<8x128xbf16> to vector<8x128xf32>
    %136 = arith.addf %135, %134 : vector<8x128xf32>
    %137 = arith.negf %136 : vector<8x128xf32>
    %138 = math.exp %137 : vector<8x128xf32>
    %cst_42 = arith.constant 1.000000e+00 : f32
    %139 = vector.broadcast %cst_42 : f32 to vector<8x128xf32>
    %140 = arith.addf %139, %138 : vector<8x128xf32>
    %141 = arith.divf %139, %140 : vector<8x128xf32>
    %142 = vector.extract_strided_slice %130 {offsets = [0, 128], sizes = [8, 128], strides = [1, 1]} : vector<8x384xbf16> to vector<8x128xbf16>
    %143 = vector.extract_strided_slice %132 {offsets = [0, 128], sizes = [8, 128], strides = [1, 1]} : vector<8x384xf32> to vector<8x128xf32>
    %144 = arith.extf %142 : vector<8x128xbf16> to vector<8x128xf32>
    %145 = arith.addf %144, %143 : vector<8x128xf32>
    %146 = arith.negf %145 : vector<8x128xf32>
    %147 = math.exp %146 : vector<8x128xf32>
    %cst_43 = arith.constant 1.000000e+00 : f32
    %148 = vector.broadcast %cst_43 : f32 to vector<8x128xf32>
    %149 = arith.addf %148, %147 : vector<8x128xf32>
    %150 = arith.divf %148, %149 : vector<8x128xf32>
    %151 = vector.extract_strided_slice %130 {offsets = [0, 256], sizes = [8, 128], strides = [1, 1]} : vector<8x384xbf16> to vector<8x128xbf16>
    %152 = vector.extract_strided_slice %132 {offsets = [0, 256], sizes = [8, 128], strides = [1, 1]} : vector<8x384xf32> to vector<8x128xf32>
    %153 = arith.addf %152, %6 : vector<8x128xf32>
    %154 = arith.mulf %141, %153 : vector<8x128xf32>
    %155 = arith.extf %151 : vector<8x128xbf16> to vector<8x128xf32>
    %156 = arith.addf %155, %154 : vector<8x128xf32>
    %157 = math.tanh %156 : vector<8x128xf32>
    %158 = arith.subf %127, %157 : vector<8x128xf32>
    %159 = arith.mulf %150, %158 : vector<8x128xf32>
    %160 = arith.addf %157, %159 : vector<8x128xf32>
    %c0_44 = arith.constant 0 : index
    %c0_45 = arith.constant 0 : index
    %161 = vector.load %arg7[%c0_44, %c0_45] : memref<8x128xf32, #tpu.memory_space<vmem>>, vector<8x128xf32>
    tpu.vector_store %arg7[%c0_44, %c0_45], %160 {strides = array<i32>} : memref<8x128xf32, #tpu.memory_space<vmem>>, vector<8x128xf32>,
    %162 = arith.truncf %160 : vector<8x128xf32> to vector<8x128xbf16>
    %c0_46 = arith.constant 0 : index
    %163 = arith.index_cast %c3_i32 : i32 to index
    %c0_47 = arith.constant 0 : index
    %164 = vector.load %arg5[%c0_46, %163, %c0_47] : memref<8x8x128xbf16, #tpu.memory_space<vmem>>, vector<8x1x128xbf16>
    %165 = vector.shape_cast %164 : vector<8x1x128xbf16> to vector<8x128xbf16>
    %166 = vector.shape_cast %162 : vector<8x128xbf16> to vector<8x1x128xbf16>
    tpu.vector_store %arg5[%c0_46, %163, %c0_47], %166 {strides = array<i32>} : memref<8x8x128xbf16, #tpu.memory_space<vmem>>, vector<8x1x128xbf16>,
    %c4_i32 = arith.constant 4 : i32
    %c0_48 = arith.constant 0 : index
    %c0_49 = arith.constant 0 : index
    %167 = vector.load %arg7[%c0_48, %c0_49] : memref<8x128xf32, #tpu.memory_space<vmem>>, vector<8x128xf32>
    %168 = arith.index_cast %c4_i32 : i32 to index
    %c0_50 = arith.constant 0 : index
    %c0_51 = arith.constant 0 : index
    %169 = vector.load %arg2[%168, %c0_50, %c0_51] : memref<8x8x384xbf16, #tpu.memory_space<vmem>>, vector<1x8x384xbf16>
    %170 = vector.shape_cast %169 : vector<1x8x384xbf16> to vector<8x384xbf16>
    %171 = arith.truncf %167 : vector<8x128xf32> to vector<8x128xbf16>
    %cst_52 = arith.constant dense<0.000000e+00> : vector<8x384xf32>
    %172 = tpu.matmul %171, %3, %cst_52 {dimension_numbers = #tpu.dot_dimension_numbers<[1], [0], [0], [1], [0, 0, 1, 1], [], []>} : vector<8x128xbf16>, vector<128x384xbf16>, vector<8x384xf32> -> vector<8x384xf32>
    %173 = vector.extract_strided_slice %170 {offsets = [0, 0], sizes = [8, 128], strides = [1, 1]} : vector<8x384xbf16> to vector<8x128xbf16>
    %174 = vector.extract_strided_slice %172 {offsets = [0, 0], sizes = [8, 128], strides = [1, 1]} : vector<8x384xf32> to vector<8x128xf32>
    %175 = arith.extf %173 : vector<8x128xbf16> to vector<8x128xf32>
    %176 = arith.addf %175, %174 : vector<8x128xf32>
    %177 = arith.negf %176 : vector<8x128xf32>
    %178 = math.exp %177 : vector<8x128xf32>
    %cst_53 = arith.constant 1.000000e+00 : f32
    %179 = vector.broadcast %cst_53 : f32 to vector<8x128xf32>
    %180 = arith.addf %179, %178 : vector<8x128xf32>
    %181 = arith.divf %179, %180 : vector<8x128xf32>
    %182 = vector.extract_strided_slice %170 {offsets = [0, 128], sizes = [8, 128], strides = [1, 1]} : vector<8x384xbf16> to vector<8x128xbf16>
    %183 = vector.extract_strided_slice %172 {offsets = [0, 128], sizes = [8, 128], strides = [1, 1]} : vector<8x384xf32> to vector<8x128xf32>
    %184 = arith.extf %182 : vector<8x128xbf16> to vector<8x128xf32>
    %185 = arith.addf %184, %183 : vector<8x128xf32>
    %186 = arith.negf %185 : vector<8x128xf32>
    %187 = math.exp %186 : vector<8x128xf32>
    %cst_54 = arith.constant 1.000000e+00 : f32
    %188 = vector.broadcast %cst_54 : f32 to vector<8x128xf32>
    %189 = arith.addf %188, %187 : vector<8x128xf32>
    %190 = arith.divf %188, %189 : vector<8x128xf32>
    %191 = vector.extract_strided_slice %170 {offsets = [0, 256], sizes = [8, 128], strides = [1, 1]} : vector<8x384xbf16> to vector<8x128xbf16>
    %192 = vector.extract_strided_slice %172 {offsets = [0, 256], sizes = [8, 128], strides = [1, 1]} : vector<8x384xf32> to vector<8x128xf32>
    %193 = arith.addf %192, %6 : vector<8x128xf32>
    %194 = arith.mulf %181, %193 : vector<8x128xf32>
    %195 = arith.extf %191 : vector<8x128xbf16> to vector<8x128xf32>
    %196 = arith.addf %195, %194 : vector<8x128xf32>
    %197 = math.tanh %196 : vector<8x128xf32>
    %198 = arith.subf %167, %197 : vector<8x128xf32>
    %199 = arith.mulf %190, %198 : vector<8x128xf32>
    %200 = arith.addf %197, %199 : vector<8x128xf32>
    %c0_55 = arith.constant 0 : index
    %c0_56 = arith.constant 0 : index
    %201 = vector.load %arg7[%c0_55, %c0_56] : memref<8x128xf32, #tpu.memory_space<vmem>>, vector<8x128xf32>
    tpu.vector_store %arg7[%c0_55, %c0_56], %200 {strides = array<i32>} : memref<8x128xf32, #tpu.memory_space<vmem>>, vector<8x128xf32>,
    %202 = arith.truncf %200 : vector<8x128xf32> to vector<8x128xbf16>
    %c0_57 = arith.constant 0 : index
    %203 = arith.index_cast %c4_i32 : i32 to index
    %c0_58 = arith.constant 0 : index
    %204 = vector.load %arg5[%c0_57, %203, %c0_58] : memref<8x8x128xbf16, #tpu.memory_space<vmem>>, vector<8x1x128xbf16>
    %205 = vector.shape_cast %204 : vector<8x1x128xbf16> to vector<8x128xbf16>
    %206 = vector.shape_cast %202 : vector<8x128xbf16> to vector<8x1x128xbf16>
    tpu.vector_store %arg5[%c0_57, %203, %c0_58], %206 {strides = array<i32>} : memref<8x8x128xbf16, #tpu.memory_space<vmem>>, vector<8x1x128xbf16>,
    %c5_i32 = arith.constant 5 : i32
    %c0_59 = arith.constant 0 : index
    %c0_60 = arith.constant 0 : index
    %207 = vector.load %arg7[%c0_59, %c0_60] : memref<8x128xf32, #tpu.memory_space<vmem>>, vector<8x128xf32>
    %208 = arith.index_cast %c5_i32 : i32 to index
    %c0_61 = arith.constant 0 : index
    %c0_62 = arith.constant 0 : index
    %209 = vector.load %arg2[%208, %c0_61, %c0_62] : memref<8x8x384xbf16, #tpu.memory_space<vmem>>, vector<1x8x384xbf16>
    %210 = vector.shape_cast %209 : vector<1x8x384xbf16> to vector<8x384xbf16>
    %211 = arith.truncf %207 : vector<8x128xf32> to vector<8x128xbf16>
    %cst_63 = arith.constant dense<0.000000e+00> : vector<8x384xf32>
    %212 = tpu.matmul %211, %3, %cst_63 {dimension_numbers = #tpu.dot_dimension_numbers<[1], [0], [0], [1], [0, 0, 1, 1], [], []>} : vector<8x128xbf16>, vector<128x384xbf16>, vector<8x384xf32> -> vector<8x384xf32>
    %213 = vector.extract_strided_slice %210 {offsets = [0, 0], sizes = [8, 128], strides = [1, 1]} : vector<8x384xbf16> to vector<8x128xbf16>
    %214 = vector.extract_strided_slice %212 {offsets = [0, 0], sizes = [8, 128], strides = [1, 1]} : vector<8x384xf32> to vector<8x128xf32>
    %215 = arith.extf %213 : vector<8x128xbf16> to vector<8x128xf32>
    %216 = arith.addf %215, %214 : vector<8x128xf32>
    %217 = arith.negf %216 : vector<8x128xf32>
    %218 = math.exp %217 : vector<8x128xf32>
    %cst_64 = arith.constant 1.000000e+00 : f32
    %219 = vector.broadcast %cst_64 : f32 to vector<8x128xf32>
    %220 = arith.addf %219, %218 : vector<8x128xf32>
    %221 = arith.divf %219, %220 : vector<8x128xf32>
    %222 = vector.extract_strided_slice %210 {offsets = [0, 128], sizes = [8, 128], strides = [1, 1]} : vector<8x384xbf16> to vector<8x128xbf16>
    %223 = vector.extract_strided_slice %212 {offsets = [0, 128], sizes = [8, 128], strides = [1, 1]} : vector<8x384xf32> to vector<8x128xf32>
    %224 = arith.extf %222 : vector<8x128xbf16> to vector<8x128xf32>
    %225 = arith.addf %224, %223 : vector<8x128xf32>
    %226 = arith.negf %225 : vector<8x128xf32>
    %227 = math.exp %226 : vector<8x128xf32>
    %cst_65 = arith.constant 1.000000e+00 : f32
    %228 = vector.broadcast %cst_65 : f32 to vector<8x128xf32>
    %229 = arith.addf %228, %227 : vector<8x128xf32>
    %230 = arith.divf %228, %229 : vector<8x128xf32>
    %231 = vector.extract_strided_slice %210 {offsets = [0, 256], sizes = [8, 128], strides = [1, 1]} : vector<8x384xbf16> to vector<8x128xbf16>
    %232 = vector.extract_strided_slice %212 {offsets = [0, 256], sizes = [8, 128], strides = [1, 1]} : vector<8x384xf32> to vector<8x128xf32>
    %233 = arith.addf %232, %6 : vector<8x128xf32>
    %234 = arith.mulf %221, %233 : vector<8x128xf32>
    %235 = arith.extf %231 : vector<8x128xbf16> to vector<8x128xf32>
    %236 = arith.addf %235, %234 : vector<8x128xf32>
    %237 = math.tanh %236 : vector<8x128xf32>
    %238 = arith.subf %207, %237 : vector<8x128xf32>
    %239 = arith.mulf %230, %238 : vector<8x128xf32>
    %240 = arith.addf %237, %239 : vector<8x128xf32>
    %c0_66 = arith.constant 0 : index
    %c0_67 = arith.constant 0 : index
    %241 = vector.load %arg7[%c0_66, %c0_67] : memref<8x128xf32, #tpu.memory_space<vmem>>, vector<8x128xf32>
    tpu.vector_store %arg7[%c0_66, %c0_67], %240 {strides = array<i32>} : memref<8x128xf32, #tpu.memory_space<vmem>>, vector<8x128xf32>,
    %242 = arith.truncf %240 : vector<8x128xf32> to vector<8x128xbf16>
    %c0_68 = arith.constant 0 : index
    %243 = arith.index_cast %c5_i32 : i32 to index
    %c0_69 = arith.constant 0 : index
    %244 = vector.load %arg5[%c0_68, %243, %c0_69] : memref<8x8x128xbf16, #tpu.memory_space<vmem>>, vector<8x1x128xbf16>
    %245 = vector.shape_cast %244 : vector<8x1x128xbf16> to vector<8x128xbf16>
    %246 = vector.shape_cast %242 : vector<8x128xbf16> to vector<8x1x128xbf16>
    tpu.vector_store %arg5[%c0_68, %243, %c0_69], %246 {strides = array<i32>} : memref<8x8x128xbf16, #tpu.memory_space<vmem>>, vector<8x1x128xbf16>,
    %c6_i32 = arith.constant 6 : i32
    %c0_70 = arith.constant 0 : index
    %c0_71 = arith.constant 0 : index
    %247 = vector.load %arg7[%c0_70, %c0_71] : memref<8x128xf32, #tpu.memory_space<vmem>>, vector<8x128xf32>
    %248 = arith.index_cast %c6_i32 : i32 to index
    %c0_72 = arith.constant 0 : index
    %c0_73 = arith.constant 0 : index
    %249 = vector.load %arg2[%248, %c0_72, %c0_73] : memref<8x8x384xbf16, #tpu.memory_space<vmem>>, vector<1x8x384xbf16>
    %250 = vector.shape_cast %249 : vector<1x8x384xbf16> to vector<8x384xbf16>
    %251 = arith.truncf %247 : vector<8x128xf32> to vector<8x128xbf16>
    %cst_74 = arith.constant dense<0.000000e+00> : vector<8x384xf32>
    %252 = tpu.matmul %251, %3, %cst_74 {dimension_numbers = #tpu.dot_dimension_numbers<[1], [0], [0], [1], [0, 0, 1, 1], [], []>} : vector<8x128xbf16>, vector<128x384xbf16>, vector<8x384xf32> -> vector<8x384xf32>
    %253 = vector.extract_strided_slice %250 {offsets = [0, 0], sizes = [8, 128], strides = [1, 1]} : vector<8x384xbf16> to vector<8x128xbf16>
    %254 = vector.extract_strided_slice %252 {offsets = [0, 0], sizes = [8, 128], strides = [1, 1]} : vector<8x384xf32> to vector<8x128xf32>
    %255 = arith.extf %253 : vector<8x128xbf16> to vector<8x128xf32>
    %256 = arith.addf %255, %254 : vector<8x128xf32>
    %257 = arith.negf %256 : vector<8x128xf32>
    %258 = math.exp %257 : vector<8x128xf32>
    %cst_75 = arith.constant 1.000000e+00 : f32
    %259 = vector.broadcast %cst_75 : f32 to vector<8x128xf32>
    %260 = arith.addf %259, %258 : vector<8x128xf32>
    %261 = arith.divf %259, %260 : vector<8x128xf32>
    %262 = vector.extract_strided_slice %250 {offsets = [0, 128], sizes = [8, 128], strides = [1, 1]} : vector<8x384xbf16> to vector<8x128xbf16>
    %263 = vector.extract_strided_slice %252 {offsets = [0, 128], sizes = [8, 128], strides = [1, 1]} : vector<8x384xf32> to vector<8x128xf32>
    %264 = arith.extf %262 : vector<8x128xbf16> to vector<8x128xf32>
    %265 = arith.addf %264, %263 : vector<8x128xf32>
    %266 = arith.negf %265 : vector<8x128xf32>
    %267 = math.exp %266 : vector<8x128xf32>
    %cst_76 = arith.constant 1.000000e+00 : f32
    %268 = vector.broadcast %cst_76 : f32 to vector<8x128xf32>
    %269 = arith.addf %268, %267 : vector<8x128xf32>
    %270 = arith.divf %268, %269 : vector<8x128xf32>
    %271 = vector.extract_strided_slice %250 {offsets = [0, 256], sizes = [8, 128], strides = [1, 1]} : vector<8x384xbf16> to vector<8x128xbf16>
    %272 = vector.extract_strided_slice %252 {offsets = [0, 256], sizes = [8, 128], strides = [1, 1]} : vector<8x384xf32> to vector<8x128xf32>
    %273 = arith.addf %272, %6 : vector<8x128xf32>
    %274 = arith.mulf %261, %273 : vector<8x128xf32>
    %275 = arith.extf %271 : vector<8x128xbf16> to vector<8x128xf32>
    %276 = arith.addf %275, %274 : vector<8x128xf32>
    %277 = math.tanh %276 : vector<8x128xf32>
    %278 = arith.subf %247, %277 : vector<8x128xf32>
    %279 = arith.mulf %270, %278 : vector<8x128xf32>
    %280 = arith.addf %277, %279 : vector<8x128xf32>
    %c0_77 = arith.constant 0 : index
    %c0_78 = arith.constant 0 : index
    %281 = vector.load %arg7[%c0_77, %c0_78] : memref<8x128xf32, #tpu.memory_space<vmem>>, vector<8x128xf32>
    tpu.vector_store %arg7[%c0_77, %c0_78], %280 {strides = array<i32>} : memref<8x128xf32, #tpu.memory_space<vmem>>, vector<8x128xf32>,
    %282 = arith.truncf %280 : vector<8x128xf32> to vector<8x128xbf16>
    %c0_79 = arith.constant 0 : index
    %283 = arith.index_cast %c6_i32 : i32 to index
    %c0_80 = arith.constant 0 : index
    %284 = vector.load %arg5[%c0_79, %283, %c0_80] : memref<8x8x128xbf16, #tpu.memory_space<vmem>>, vector<8x1x128xbf16>
    %285 = vector.shape_cast %284 : vector<8x1x128xbf16> to vector<8x128xbf16>
    %286 = vector.shape_cast %282 : vector<8x128xbf16> to vector<8x1x128xbf16>
    tpu.vector_store %arg5[%c0_79, %283, %c0_80], %286 {strides = array<i32>} : memref<8x8x128xbf16, #tpu.memory_space<vmem>>, vector<8x1x128xbf16>,
    %c7_i32 = arith.constant 7 : i32
    %c0_81 = arith.constant 0 : index
    %c0_82 = arith.constant 0 : index
    %287 = vector.load %arg7[%c0_81, %c0_82] : memref<8x128xf32, #tpu.memory_space<vmem>>, vector<8x128xf32>
    %288 = arith.index_cast %c7_i32 : i32 to index
    %c0_83 = arith.constant 0 : index
    %c0_84 = arith.constant 0 : index
    %289 = vector.load %arg2[%288, %c0_83, %c0_84] : memref<8x8x384xbf16, #tpu.memory_space<vmem>>, vector<1x8x384xbf16>
    %290 = vector.shape_cast %289 : vector<1x8x384xbf16> to vector<8x384xbf16>
    %291 = arith.truncf %287 : vector<8x128xf32> to vector<8x128xbf16>
    %cst_85 = arith.constant dense<0.000000e+00> : vector<8x384xf32>
    %292 = tpu.matmul %291, %3, %cst_85 {dimension_numbers = #tpu.dot_dimension_numbers<[1], [0], [0], [1], [0, 0, 1, 1], [], []>} : vector<8x128xbf16>, vector<128x384xbf16>, vector<8x384xf32> -> vector<8x384xf32>
    %293 = vector.extract_strided_slice %290 {offsets = [0, 0], sizes = [8, 128], strides = [1, 1]} : vector<8x384xbf16> to vector<8x128xbf16>
    %294 = vector.extract_strided_slice %292 {offsets = [0, 0], sizes = [8, 128], strides = [1, 1]} : vector<8x384xf32> to vector<8x128xf32>
    %295 = arith.extf %293 : vector<8x128xbf16> to vector<8x128xf32>
    %296 = arith.addf %295, %294 : vector<8x128xf32>
    %297 = arith.negf %296 : vector<8x128xf32>
    %298 = math.exp %297 : vector<8x128xf32>
    %cst_86 = arith.constant 1.000000e+00 : f32
    %299 = vector.broadcast %cst_86 : f32 to vector<8x128xf32>
    %300 = arith.addf %299, %298 : vector<8x128xf32>
    %301 = arith.divf %299, %300 : vector<8x128xf32>
    %302 = vector.extract_strided_slice %290 {offsets = [0, 128], sizes = [8, 128], strides = [1, 1]} : vector<8x384xbf16> to vector<8x128xbf16>
    %303 = vector.extract_strided_slice %292 {offsets = [0, 128], sizes = [8, 128], strides = [1, 1]} : vector<8x384xf32> to vector<8x128xf32>
    %304 = arith.extf %302 : vector<8x128xbf16> to vector<8x128xf32>
    %305 = arith.addf %304, %303 : vector<8x128xf32>
    %306 = arith.negf %305 : vector<8x128xf32>
    %307 = math.exp %306 : vector<8x128xf32>
    %cst_87 = arith.constant 1.000000e+00 : f32
    %308 = vector.broadcast %cst_87 : f32 to vector<8x128xf32>
    %309 = arith.addf %308, %307 : vector<8x128xf32>
    %310 = arith.divf %308, %309 : vector<8x128xf32>
    %311 = vector.extract_strided_slice %290 {offsets = [0, 256], sizes = [8, 128], strides = [1, 1]} : vector<8x384xbf16> to vector<8x128xbf16>
    %312 = vector.extract_strided_slice %292 {offsets = [0, 256], sizes = [8, 128], strides = [1, 1]} : vector<8x384xf32> to vector<8x128xf32>
    %313 = arith.addf %312, %6 : vector<8x128xf32>
    %314 = arith.mulf %301, %313 : vector<8x128xf32>
    %315 = arith.extf %311 : vector<8x128xbf16> to vector<8x128xf32>
    %316 = arith.addf %315, %314 : vector<8x128xf32>
    %317 = math.tanh %316 : vector<8x128xf32>
    %318 = arith.subf %287, %317 : vector<8x128xf32>
    %319 = arith.mulf %310, %318 : vector<8x128xf32>
    %320 = arith.addf %317, %319 : vector<8x128xf32>
    %c0_88 = arith.constant 0 : index
    %c0_89 = arith.constant 0 : index
    %321 = vector.load %arg7[%c0_88, %c0_89] : memref<8x128xf32, #tpu.memory_space<vmem>>, vector<8x128xf32>
    tpu.vector_store %arg7[%c0_88, %c0_89], %320 {strides = array<i32>} : memref<8x128xf32, #tpu.memory_space<vmem>>, vector<8x128xf32>,
    %322 = arith.truncf %320 : vector<8x128xf32> to vector<8x128xbf16>
    %c0_90 = arith.constant 0 : index
    %323 = arith.index_cast %c7_i32 : i32 to index
    %c0_91 = arith.constant 0 : index
    %324 = vector.load %arg5[%c0_90, %323, %c0_91] : memref<8x8x128xbf16, #tpu.memory_space<vmem>>, vector<8x1x128xbf16>
    %325 = vector.shape_cast %324 : vector<8x1x128xbf16> to vector<8x128xbf16>
    %326 = vector.shape_cast %322 : vector<8x128xbf16> to vector<8x1x128xbf16>
    tpu.vector_store %arg5[%c0_90, %323, %c0_91], %326 {strides = array<i32>} : memref<8x8x128xbf16, #tpu.memory_space<vmem>>, vector<8x1x128xbf16>,
    %c8_i32 = arith.constant 8 : i32
    %c0_i32_92 = arith.constant 0 : i32
    %327 = arith.cmpi eq, %arg1, %c0_i32_92 : i32
    %328 = arith.extui %327 : i1 to i32
    %c0_i32_93 = arith.constant 0 : i32
    %329 = arith.cmpi ne, %328, %c0_i32_93 : i32
    scf.if %329 {
      %c0_94 = arith.constant 0 : index
      %c0_95 = arith.constant 0 : index
      %330 = vector.load %arg7[%c0_94, %c0_95] : memref<8x128xf32, #tpu.memory_space<vmem>>, vector<8x128xf32>
      %c0_96 = arith.constant 0 : index
      %c0_97 = arith.constant 0 : index
      %c0_98 = arith.constant 0 : index
      %331 = vector.load %arg6[%c0_96, %c0_97, %c0_98] : memref<1x8x128xf32, #tpu.memory_space<vmem>>, vector<1x8x128xf32>
      %332 = vector.shape_cast %331 : vector<1x8x128xf32> to vector<8x128xf32>
      %333 = vector.shape_cast %330 : vector<8x128xf32> to vector<1x8x128xf32>
      tpu.vector_store %arg6[%c0_96, %c0_97, %c0_98], %333 {strides = array<i32>} : memref<1x8x128xf32, #tpu.memory_space<vmem>>, vector<1x8x128xf32>,
    } else {
    }
    return
  }
  func.func @transform_0(%arg0: i32, %arg1: i32) -> (i32, i32, i32) {
    %c0_i32 = arith.constant 0 : i32
    %c0_i32_0 = arith.constant 0 : i32
    return %arg1, %arg0, %c0_i32 : i32, i32, i32
  }
  func.func @transform_1(%arg0: i32, %arg1: i32) -> (i32, i32) {
    %c0_i32 = arith.constant 0 : i32
    %c0_i32_0 = arith.constant 0 : i32
    %c0_i32_1 = arith.constant 0 : i32
    return %c0_i32, %c0_i32_0 : i32, i32
  }
  func.func @transform_2(%arg0: i32, %arg1: i32) -> (i32, i32) {
    %c0_i32 = arith.constant 0 : i32
    %c0_i32_0 = arith.constant 0 : i32
    %c0_i32_1 = arith.constant 0 : i32
    return %c0_i32, %c0_i32_0 : i32, i32
  }
  func.func @transform_3(%arg0: i32, %arg1: i32) -> (i32, i32, i32) {
    %c0_i32 = arith.constant 0 : i32
    %c0_i32_0 = arith.constant 0 : i32
    return %arg0, %arg1, %c0_i32 : i32, i32, i32
  }
  func.func @transform_4(%arg0: i32, %arg1: i32) -> (i32, i32, i32) {
    %c0_i32 = arith.constant 0 : i32
    %c0_i32_0 = arith.constant 0 : i32
    %c0_i32_1 = arith.constant 0 : i32
    return %c0_i32, %arg0, %c0_i32_0 : i32, i32, i32
  }
}

</mosaic_0001>

<llo_original>
// kernel: encoder_rnn_forward.1
$region0: #{encoder_rnn_forward.1}
  #allocation0 [shape = 'u32[]', space=smem, size = 0x4, offset = 0x4, fixed_abs, tag = 'smem constant byte address 0x4 - core index']
  #allocation1 [shape = 'u32[144,128]{1,0:T(1,128)}', space=vmem, size = 0x12000, scoped, tag = 'internal scratch']
  #allocation2 [shape = 'f32[8,128]{1,0:T(8,128)}', space=vmem, size = 0x1000, scoped, tag = 'scratch operand']
  %s0 = inlined_call_operand.vmem [shape: bf16[8,8,384], index: 0, kind: input, shape index: {}]
  %s1 = inlined_call_operand.vmem [shape: bf16[128,384], index: 1, kind: input, shape index: {}]
  %s2 = inlined_call_operand.vmem [shape: f32[1,128], index: 2, kind: input, shape index: {}]
  %s3 = inlined_call_operand.vmem [shape: bf16[8,8,128], index: 3, kind: output, shape index: {0}]
  %s4 = inlined_call_operand.hbm [shape: f32[1,8,128], index: 4, kind: output, shape index: {1}]
  %5 = xla_tuple %s3, %s4
  %s6 = sld [smem:[#allocation0]]
  $region38: #{encoder_rnn_forward.1} parent=0
    _
  %s8 = ssub.s32 1, %s6
  %s9 = scalar_select 0, %s8, %s6
  $region1: #{encoder_rnn_forward.1} parent=0
    #allocation3 [shape = 'u8[4096]{0}', space=vmem, size = 0x1000, scoped, tag = 'output window, operand 1, single buffered']
    #allocation4 [shape = 's32[1]{0}', space=sflag, size = 0x4, scoped, tag = 'scoped memory for encoder_rnn_forward.1']
    %10 = vsyncpa [#allocation4], 0
    // Predicated region
    $region2: #{encoder_rnn_forward.1} parent=1 // pred_check
      _
    $region3: #{encoder_rnn_forward.1} parent=1 // pred_check_branch
      %12 = sbr.rel (0) target = $region5
    $region4: #{encoder_rnn_forward.1} parent=1 // pred_region
      _
    $region5: #{encoder_rnn_forward.1} parent=1 // pred_fallthru
      _
    // Predicated region
    $region6: #{encoder_rnn_forward.1} parent=1 // pred_check
      _
    $region7: #{encoder_rnn_forward.1} parent=1 // pred_check_branch
      %14 = sbr.rel (0) target = $region9
    $region8: #{encoder_rnn_forward.1} parent=1 // pred_region
      _
    $region9: #{encoder_rnn_forward.1} parent=1 // pred_fallthru
      _
    // Predicated region
    $region10: #{encoder_rnn_forward.1} parent=1 // pred_check
      _
    $region11: #{encoder_rnn_forward.1} parent=1 // pred_check_branch
      %16 = sbr.rel (0) target = $region13
    $region12: #{encoder_rnn_forward.1} parent=1 // pred_region
      _
    $region13: #{encoder_rnn_forward.1} parent=1 // pred_fallthru
      _
    %p18 = scmp.eq.s32.totalorder 0, 0
    // Predicated region
    $region14: #{encoder_rnn_forward.1} parent=1 // pred_check
      %p19 = pneg %p18
    $region15: #{encoder_rnn_forward.1} parent=1 // pred_check_branch
      %21 = sbr.rel (%p19) target = $region17
    $region16: #{encoder_rnn_forward.1} parent=1 // pred_region
      %22 = vst [vmem:[#allocation2] sm:$0xff] 0.0
    $region17: #{encoder_rnn_forward.1} parent=1 // pred_fallthru
      _
    %v23 = vld [vmem:[%s1] sm:$0xff]
    %v24 = vld [vmem:[%s1 + $0x8] sm:$0xf]
    %v25 = vld [vmem:[%s1 + $0xc] sm:$0xff]
    %v26 = vld [vmem:[%s1 + $0x14] sm:$0xf]
    %v27 = vld [vmem:[%s1 + $0x18] sm:$0xff]
    %v28 = vld [vmem:[%s1 + $0x20] sm:$0xf]
    %v29 = vld [vmem:[%s1 + $0x24] sm:$0xff]
    %v30 = vld [vmem:[%s1 + $0x2c] sm:$0xf]
    %v31 = vld [vmem:[%s1 + $0x30] sm:$0xff]
    %v32 = vld [vmem:[%s1 + $0x38] sm:$0xf]
    %v33 = vld [vmem:[%s1 + $0x3c] sm:$0xff]
    %v34 = vld [vmem:[%s1 + $0x44] sm:$0xf]
    %v35 = vld [vmem:[%s1 + $0x48] sm:$0xff]
    %v36 = vld [vmem:[%s1 + $0x50] sm:$0xf]
    %v37 = vld [vmem:[%s1 + $0x54] sm:$0xff]
    %v38 = vld [vmem:[%s1 + $0x5c] sm:$0xf]
    %v39 = vld [vmem:[%s1 + $0x60] sm:$0xff]
    %v40 = vld [vmem:[%s1 + $0x68] sm:$0xf]
    %v41 = vld [vmem:[%s1 + $0x6c] sm:$0xff]
    %v42 = vld [vmem:[%s1 + $0x74] sm:$0xf]
    %v43 = vld [vmem:[%s1 + $0x78] sm:$0xff]
    %v44 = vld [vmem:[%s1 + $0x80] sm:$0xf]
    %v45 = vld [vmem:[%s1 + $0x84] sm:$0xff]
    %v46 = vld [vmem:[%s1 + $0x8c] sm:$0xf]
    %v47 = vld [vmem:[%s1 + $0x90] sm:$0xff]
    %v48 = vld [vmem:[%s1 + $0x98] sm:$0xf]
    %v49 = vld [vmem:[%s1 + $0x9c] sm:$0xff]
    %v50 = vld [vmem:[%s1 + $0xa4] sm:$0xf]
    %v51 = vld [vmem:[%s1 + $0xa8] sm:$0xff]
    %v52 = vld [vmem:[%s1 + $0xb0] sm:$0xf]
    %v53 = vld [vmem:[%s1 + $0xb4] sm:$0xff]
    %v54 = vld [vmem:[%s1 + $0xbc] sm:$0xf]
    %v55 = vld [vmem:[%s2] sm:$0x1]
    %v57 = vlaneseq
    %v58 = vshrl.u32 %v57, 7
    %v59 = vsub.s32 0, %v58
    %v60 = vrot.slane %v55, %v59
    %v62 = vld [vmem:[#allocation2] sm:$0xff]
    %v63 = vld [vmem:[%s0] sm:$0xff]
    %v64 = vld [vmem:[%s0 + $0x8] sm:$0xf]
    %v65 = vpack.c.bf16 %v62, %v62
    %v98 = vunpack.c.l.b16 %v23
    %v99 = vunpack.c.h.b16 %v23
    %v100 = vunpack.c.l.b16 %v24
    %v101 = vunpack.c.l.b16 %v25
    %v102 = vunpack.c.h.b16 %v25
    %v103 = vunpack.c.l.b16 %v26
    %v104 = vunpack.c.l.b16 %v27
    %v105 = vunpack.c.h.b16 %v27
    %v106 = vunpack.c.l.b16 %v28
    %v107 = vunpack.c.l.b16 %v29
    %v108 = vunpack.c.h.b16 %v29
    %v109 = vunpack.c.l.b16 %v30
    %v110 = vunpack.c.l.b16 %v31
    %v111 = vunpack.c.h.b16 %v31
    %v112 = vunpack.c.l.b16 %v32
    %v113 = vunpack.c.l.b16 %v33
    %v114 = vunpack.c.h.b16 %v33
    %v115 = vunpack.c.l.b16 %v34
    %v116 = vunpack.c.l.b16 %v35
    %v117 = vunpack.c.h.b16 %v35
    %v118 = vunpack.c.l.b16 %v36
    %v119 = vunpack.c.l.b16 %v37
    %v120 = vunpack.c.h.b16 %v37
    %v121 = vunpack.c.l.b16 %v38
    %v122 = vunpack.c.l.b16 %v39
    %v123 = vunpack.c.h.b16 %v39
    %v124 = vunpack.c.l.b16 %v40
    %v125 = vunpack.c.l.b16 %v41
    %v126 = vunpack.c.h.b16 %v41
    %v127 = vunpack.c.l.b16 %v42
    %v128 = vunpack.c.l.b16 %v43
    %v129 = vunpack.c.h.b16 %v43
    %v130 = vunpack.c.l.b16 %v44
    %v131 = vunpack.c.l.b16 %v45
    %v132 = vunpack.c.h.b16 %v45
    %v133 = vunpack.c.l.b16 %v46
    %v134 = vunpack.c.l.b16 %v47
    %v135 = vunpack.c.h.b16 %v47
    %v136 = vunpack.c.l.b16 %v48
    %v137 = vunpack.c.l.b16 %v49
    %v138 = vunpack.c.h.b16 %v49
    %v139 = vunpack.c.l.b16 %v50
    %v140 = vunpack.c.l.b16 %v51
    %v141 = vunpack.c.h.b16 %v51
    %v142 = vunpack.c.l.b16 %v52
    %v143 = vunpack.c.l.b16 %v53
    %v144 = vunpack.c.h.b16 %v53
    %v145 = vunpack.c.l.b16 %v54
    %v146 = vpack.c.b16 %v101, %v98
    %v147 = vpack.c.b16 %v102, %v99
    %v148 = vpack.c.b16 %v103, %v100
    %v149 = vpack.c.b16 %v107, %v104
    %v150 = vpack.c.b16 %v108, %v105
    %v151 = vpack.c.b16 %v109, %v106
    %v152 = vpack.c.b16 %v113, %v110
    %v153 = vpack.c.b16 %v114, %v111
    %v154 = vpack.c.b16 %v115, %v112
    %v155 = vpack.c.b16 %v119, %v116
    %v156 = vpack.c.b16 %v120, %v117
    %v157 = vpack.c.b16 %v121, %v118
    %v158 = vpack.c.b16 %v125, %v122
    %v159 = vpack.c.b16 %v126, %v123
    %v160 = vpack.c.b16 %v127, %v124
    %v161 = vpack.c.b16 %v131, %v128
    %v162 = vpack.c.b16 %v132, %v129
    %v163 = vpack.c.b16 %v133, %v130
    %v164 = vpack.c.b16 %v137, %v134
    %v165 = vpack.c.b16 %v138, %v135
    %v166 = vpack.c.b16 %v139, %v136
    %v167 = vpack.c.b16 %v143, %v140
    %v168 = vpack.c.b16 %v144, %v141
    %v169 = vpack.c.b16 %v145, %v142
    %194 = vmatprep.subr.bf16.mxu0 %v168
    %195 = vmatpush1.bf16.msra.mxu0 %v167
    %196 = vmatprep.subr.bf16.mxu0 %v165
    %197 = vmatpush1.bf16.msra.mxu0 %v164
    %198 = vmatprep.subr.bf16.mxu0 %v162
    %199 = vmatpush1.bf16.msra.mxu0 %v161
    %200 = vmatprep.subr.bf16.mxu0 %v159
    %201 = vmatpush1.bf16.msra.mxu0 %v158
    %202 = vmatprep.subr.bf16.mxu0 %v156
    %203 = vmatpush1.bf16.msra.mxu0 %v155
    %204 = vmatprep.subr.bf16.mxu0 %v153
    %205 = vmatpush1.bf16.msra.mxu0 %v152
    %206 = vmatprep.subr.bf16.mxu0 %v150
    %207 = vmatpush1.bf16.msra.mxu0 %v149
    %208 = vmatprep.subr.bf16.mxu0 %v147
    %209 = vmatpush1.bf16.msra.mxu0 %v146
    %210 = vmatprep.subr.bf16.mxu0 0
    %211 = vmatpush2.bf16.msra.mxu0 0
    %212 = vmatprep.subr.bf16.mxu0 0
    %213 = vmatpush2.bf16.msra.mxu0 0
    %214 = vmatprep.subr.bf16.mxu0 0
    %215 = vmatpush2.bf16.msra.mxu0 0
    %216 = vmatprep.subr.bf16.mxu0 0
    %217 = vmatpush2.bf16.msra.mxu0 0
    %218 = vmatprep.subr.bf16.mxu0 0
    %219 = vmatpush2.bf16.msra.mxu0 0
    %220 = vmatprep.subr.bf16.mxu0 0
    %221 = vmatpush2.bf16.msra.mxu0 0
    %222 = vmatprep.subr.bf16.mxu0 0
    %223 = vmatpush2.bf16.msra.mxu0 0
    %224 = vmatprep.subr.bf16.mxu0 0
    %225 = vmatpush2.bf16.msra.mxu0 0
    %226 = vmatprep.mubr.bf16.mxu0 0
    %227 = vmatmul.mubr.bf16.gmra.mxu0 %v65
    %v228 = vpop.f32.mrf.mxu0
    %v229 = vadd.f32 0.0, %v228
    %v230 = vpop.f32.mrf.mxu0
    %v231 = vadd.f32 0.0, %v230
    %v232 = vpop.f32.mrf.mxu0
    %v233 = vpop.f32.mrf.mxu0
    %234 = vdwg.mxu0
    %235 = vmatprep.subr.bf16.mxu0 0
    %236 = vmatpush1.bf16.msra.mxu0 %v169
    %237 = vmatprep.subr.bf16.mxu0 0
    %238 = vmatpush1.bf16.msra.mxu0 %v166
    %239 = vmatprep.subr.bf16.mxu0 0
    %240 = vmatpush1.bf16.msra.mxu0 %v163
    %241 = vmatprep.subr.bf16.mxu0 0
    %242 = vmatpush1.bf16.msra.mxu0 %v160
    %243 = vmatprep.subr.bf16.mxu0 0
    %244 = vmatpush1.bf16.msra.mxu0 %v157
    %245 = vmatprep.subr.bf16.mxu0 0
    %246 = vmatpush1.bf16.msra.mxu0 %v154
    %247 = vmatprep.subr.bf16.mxu0 0
    %248 = vmatpush1.bf16.msra.mxu0 %v151
    %249 = vmatprep.subr.bf16.mxu0 0
    %250 = vmatpush1.bf16.msra.mxu0 %v148
    %251 = vmatprep.subr.bf16.mxu0 0
    %252 = vmatpush2.bf16.msra.mxu0 0
    %253 = vmatprep.subr.bf16.mxu0 0
    %254 = vmatpush2.bf16.msra.mxu0 0
    %255 = vmatprep.subr.bf16.mxu0 0
    %256 = vmatpush2.bf16.msra.mxu0 0
    %257 = vmatprep.subr.bf16.mxu0 0
    %258 = vmatpush2.bf16.msra.mxu0 0
    %259 = vmatprep.subr.bf16.mxu0 0
    %260 = vmatpush2.bf16.msra.mxu0 0
    %261 = vmatprep.subr.bf16.mxu0 0
    %262 = vmatpush2.bf16.msra.mxu0 0
    %263 = vmatprep.subr.bf16.mxu0 0
    %264 = vmatpush2.bf16.msra.mxu0 0
    %265 = vmatprep.subr.bf16.mxu0 0
    %266 = vmatpush2.bf16.msra.mxu0 0
    %267 = vmatprep.mubr.bf16.mxu0 0
    %268 = vmatmul.mubr.bf16.gmra.mxu0 %v65
    %v269 = vpop.f32.mrf.mxu0
    %v270 = vadd.f32 0.0, %v269
    %v271 = vpop.f32.mrf.mxu0
    %v272 = vpop.f32.mrf.mxu0
    %v273 = vpop.f32.mrf.mxu0
    %274 = vdwg.mxu0
    %v275 = vunpack.c.l.bf16 %v63
    %v276 = vadd.f32 %v275, %v229
    %v277 = vxor.u32 %v276, 2147483648
    %v278 = vmul.f32 %v277, 1.442695
    %v279 = vpow.pop %v278
    %v280 = vadd.f32 %v279, 1.0
    %v281 = vrcp.pop %v280
    %v282 = vmul.f32 1.0, %v281
    %v284 = vrot.slane %v63, 4
    %v286 = vunpack.c.l.bf16 %v284
    %v287 = vadd.f32 %v286, %v231
    %v288 = vxor.u32 %v287, 2147483648
    %v289 = vmul.f32 %v288, 1.442695
    %v290 = vpow.pop %v289
    %v291 = vadd.f32 %v290, 1.0
    %v292 = vrcp.pop %v291
    %v293 = vmul.f32 1.0, %v292
    %v294 = vadd.f32 %v270, %v60
    %v295 = vmul.f32 %v282, %v294
    %v296 = vunpack.c.l.bf16 %v64
    %v297 = vadd.f32 %v296, %v295
    %v298 = vtanh.pop %v297
    %v299 = vsub.f32 %v62, %v298
    %v300 = vmul.f32 %v293, %v299
    %v301 = vadd.f32 %v298, %v300
    %302 = vst [vmem:[#allocation2] sm:$0xff] %v301
    %v303 = vpack.c.bf16 %v301, %v301
    %v306 = vunpack.c.l.s4 1966171168
    %v307 = vunpack.c.0.s8 %v306
    %v308 = vlaneseq
    %v309 = vshrl.u32 %v308, 7
    %v310 = vsub.s32 %v307, %v309
    %v311 = vrot.slane %v303, %v310
    %v312 = vcombine.high %v311, %v311
    %v314 = vunpack.c.l.s4 1966171168
    %v315 = vunpack.c.0.s8 %v314
    %v316 = vlaneseq
    %v317 = vshrl.u32 %v316, 7
    %v318 = vsub.s32 %v315, %v317
    %v319 = vrot.slane %v311, %v318
    %v321 = vunpack.c.l.s4 1966171168
    %v322 = vunpack.c.0.s8 %v321
    %v323 = vlaneseq
    %v324 = vshrl.u32 %v323, 7
    %v325 = vsub.s32 %v322, %v324
    %v326 = vrot.slane %v312, %v325
    %v327 = vcombine.high %v319, %v319
    %v328 = vcombine.high %v326, %v326
    %v329 = vunpack.i.l.s16 %v319
    %v330 = vunpack.i.h.s16 %v319
    %v331 = vunpack.i.l.s16 %v326
    %v332 = vunpack.i.h.s16 %v326
    %v333 = vunpack.i.l.s16 %v327
    %v334 = vunpack.i.h.s16 %v327
    %v335 = vunpack.i.l.s16 %v328
    %v336 = vunpack.i.h.s16 %v328
    %v337 = vpack.i.b16 %v329, %v329
    %v338 = vpack.i.b16 %v330, %v330
    %v339 = vpack.i.b16 %v331, %v331
    %v340 = vpack.i.b16 %v332, %v332
    %v341 = vpack.i.b16 %v333, %v333
    %v342 = vpack.i.b16 %v334, %v334
    %v343 = vpack.i.b16 %v335, %v335
    %v344 = vpack.i.b16 %v336, %v336
    %v346 = vunpack.c.l.s4 286326784
    %v347 = vunpack.c.0.s8 %v346
    %v348 = vlaneseq
    %v349 = vshrl.u32 %v348, 7
    %v350 = vsub.s32 %v347, %v349
    %v351 = vrot.slane %v337, %v350
    %v353 = vunpack.c.l.s4 286326784
    %v354 = vunpack.c.0.s8 %v353
    %v355 = vlaneseq
    %v356 = vshrl.u32 %v355, 7
    %v357 = vsub.s32 %v354, %v356
    %v358 = vrot.slane %v338, %v357
    %v360 = vunpack.c.l.s4 286326784
    %v361 = vunpack.c.0.s8 %v360
    %v362 = vlaneseq
    %v363 = vshrl.u32 %v362, 7
    %v364 = vsub.s32 %v361, %v363
    %v365 = vrot.slane %v339, %v364
    %v367 = vunpack.c.l.s4 286326784
    %v368 = vunpack.c.0.s8 %v367
    %v369 = vlaneseq
    %v370 = vshrl.u32 %v369, 7
    %v371 = vsub.s32 %v368, %v370
    %v372 = vrot.slane %v340, %v371
    %v374 = vunpack.c.l.s4 286326784
    %v375 = vunpack.c.0.s8 %v374
    %v376 = vlaneseq
    %v377 = vshrl.u32 %v376, 7
    %v378 = vsub.s32 %v375, %v377
    %v379 = vrot.slane %v341, %v378
    %v381 = vunpack.c.l.s4 286326784
    %v382 = vunpack.c.0.s8 %v381
    %v383 = vlaneseq
    %v384 = vshrl.u32 %v383, 7
    %v385 = vsub.s32 %v382, %v384
    %v386 = vrot.slane %v342, %v385
    %v388 = vunpack.c.l.s4 286326784
    %v389 = vunpack.c.0.s8 %v388
    %v390 = vlaneseq
    %v391 = vshrl.u32 %v390, 7
    %v392 = vsub.s32 %v389, %v391
    %v393 = vrot.slane %v343, %v392
    %v395 = vunpack.c.l.s4 286326784
    %v396 = vunpack.c.0.s8 %v395
    %v397 = vlaneseq
    %v398 = vshrl.u32 %v397, 7
    %v399 = vsub.s32 %v396, %v398
    %v400 = vrot.slane %v344, %v399
    %vm409 = vcmask 1040384
    %vm410 = vsmask.f32 256
    %vm411 = vmand %vm409, %vm410
    %v412 = vld [vmem:[%s3] sm:$0x1]
    %v413 = vsel %vm411, %v351, %v412
    %414 = vst [vmem:[%s3] sm:$0x1] %v413
    %v415 = vld [vmem:[%s3 + $0x4] sm:$0x1]
    %v416 = vsel %vm411, %v358, %v415
    %417 = vst [vmem:[%s3 + $0x4] sm:$0x1] %v416
    %v418 = vld [vmem:[%s3 + $0x8] sm:$0x1]
    %v419 = vsel %vm411, %v365, %v418
    %420 = vst [vmem:[%s3 + $0x8] sm:$0x1] %v419
    %v421 = vld [vmem:[%s3 + $0xc] sm:$0x1]
    %v422 = vsel %vm411, %v372, %v421
    %423 = vst [vmem:[%s3 + $0xc] sm:$0x1] %v422
    %v424 = vld [vmem:[%s3 + $0x10] sm:$0x1]
    %v425 = vsel %vm411, %v379, %v424
    %426 = vst [vmem:[%s3 + $0x10] sm:$0x1] %v425
    %v427 = vld [vmem:[%s3 + $0x14] sm:$0x1]
    %v428 = vsel %vm411, %v386, %v427
    %429 = vst [vmem:[%s3 + $0x14] sm:$0x1] %v428
    %v430 = vld [vmem:[%s3 + $0x18] sm:$0x1]
    %v431 = vsel %vm411, %v393, %v430
    %432 = vst [vmem:[%s3 + $0x18] sm:$0x1] %v431
    %v433 = vld [vmem:[%s3 + $0x1c] sm:$0x1]
    %v434 = vsel %vm411, %v400, %v433
    %435 = vst [vmem:[%s3 + $0x1c] sm:$0x1] %v434
    %v436 = vld [vmem:[#allocation2] sm:$0xff]
    %s437 = scalar_lea.vmem %s0, 12
    %v438 = vld [vmem:[%s437] sm:$0xff]
    %v439 = vld [vmem:[%s437 + $0x8] sm:$0xf]
    %v440 = vpack.c.bf16 %v436, %v436
    %441 = vmatprep.subr.bf16.mxu0 %v168
    %442 = vmatpush1.bf16.msra.mxu0 %v167
    %443 = vmatprep.subr.bf16.mxu0 %v165
    %444 = vmatpush1.bf16.msra.mxu0 %v164
    %445 = vmatprep.subr.bf16.mxu0 %v162
    %446 = vmatpush1.bf16.msra.mxu0 %v161
    %447 = vmatprep.subr.bf16.mxu0 %v159
    %448 = vmatpush1.bf16.msra.mxu0 %v158
    %449 = vmatprep.subr.bf16.mxu0 %v156
    %450 = vmatpush1.bf16.msra.mxu0 %v155
    %451 = vmatprep.subr.bf16.mxu0 %v153
    %452 = vmatpush1.bf16.msra.mxu0 %v152
    %453 = vmatprep.subr.bf16.mxu0 %v150
    %454 = vmatpush1.bf16.msra.mxu0 %v149
    %455 = vmatprep.subr.bf16.mxu0 %v147
    %456 = vmatpush1.bf16.msra.mxu0 %v146
    %457 = vmatprep.subr.bf16.mxu0 0
    %458 = vmatpush2.bf16.msra.mxu0 0
    %459 = vmatprep.subr.bf16.mxu0 0
    %460 = vmatpush2.bf16.msra.mxu0 0
    %461 = vmatprep.subr.bf16.mxu0 0
    %462 = vmatpush2.bf16.msra.mxu0 0
    %463 = vmatprep.subr.bf16.mxu0 0
    %464 = vmatpush2.bf16.msra.mxu0 0
    %465 = vmatprep.subr.bf16.mxu0 0
    %466 = vmatpush2.bf16.msra.mxu0 0
    %467 = vmatprep.subr.bf16.mxu0 0
    %468 = vmatpush2.bf16.msra.mxu0 0
    %469 = vmatprep.subr.bf16.mxu0 0
    %470 = vmatpush2.bf16.msra.mxu0 0
    %471 = vmatprep.subr.bf16.mxu0 0
    %472 = vmatpush2.bf16.msra.mxu0 0
    %473 = vmatprep.mubr.bf16.mxu0 0
    %474 = vmatmul.mubr.bf16.gmra.mxu0 %v440
    %v475 = vpop.f32.mrf.mxu0
    %v476 = vadd.f32 0.0, %v475
    %v477 = vpop.f32.mrf.mxu0
    %v478 = vadd.f32 0.0, %v477
    %v479 = vpop.f32.mrf.mxu0
    %v480 = vpop.f32.mrf.mxu0
    %481 = vdwg.mxu0
    %482 = vmatprep.subr.bf16.mxu0 0
    %483 = vmatpush1.bf16.msra.mxu0 %v169
    %484 = vmatprep.subr.bf16.mxu0 0
    %485 = vmatpush1.bf16.msra.mxu0 %v166
    %486 = vmatprep.subr.bf16.mxu0 0
    %487 = vmatpush1.bf16.msra.mxu0 %v163
    %488 = vmatprep.subr.bf16.mxu0 0
    %489 = vmatpush1.bf16.msra.mxu0 %v160
    %490 = vmatprep.subr.bf16.mxu0 0
    %491 = vmatpush1.bf16.msra.mxu0 %v157
    %492 = vmatprep.subr.bf16.mxu0 0
    %493 = vmatpush1.bf16.msra.mxu0 %v154
    %494 = vmatprep.subr.bf16.mxu0 0
    %495 = vmatpush1.bf16.msra.mxu0 %v151
    %496 = vmatprep.subr.bf16.mxu0 0
    %497 = vmatpush1.bf16.msra.mxu0 %v148
    %498 = vmatprep.subr.bf16.mxu0 0
    %499 = vmatpush2.bf16.msra.mxu0 0
    %500 = vmatprep.subr.bf16.mxu0 0
    %501 = vmatpush2.bf16.msra.mxu0 0
    %502 = vmatprep.subr.bf16.mxu0 0
    %503 = vmatpush2.bf16.msra.mxu0 0
    %504 = vmatprep.subr.bf16.mxu0 0
    %505 = vmatpush2.bf16.msra.mxu0 0
    %506 = vmatprep.subr.bf16.mxu0 0
    %507 = vmatpush2.bf16.msra.mxu0 0
    %508 = vmatprep.subr.bf16.mxu0 0
    %509 = vmatpush2.bf16.msra.mxu0 0
    %510 = vmatprep.subr.bf16.mxu0 0
    %511 = vmatpush2.bf16.msra.mxu0 0
    %512 = vmatprep.subr.bf16.mxu0 0
    %513 = vmatpush2.bf16.msra.mxu0 0
    %514 = vmatprep.mubr.bf16.mxu0 0
    %515 = vmatmul.mubr.bf16.gmra.mxu0 %v440
    %v516 = vpop.f32.mrf.mxu0
    %v517 = vadd.f32 0.0, %v516
    %v518 = vpop.f32.mrf.mxu0
    %v519 = vpop.f32.mrf.mxu0
    %v520 = vpop.f32.mrf.mxu0
    %521 = vdwg.mxu0
    %v522 = vunpack.c.l.bf16 %v438
    %v523 = vadd.f32 %v522, %v476
    %v524 = vxor.u32 %v523, 2147483648
    %v525 = vmul.f32 %v524, 1.442695
    %v526 = vpow.pop %v525
    %v527 = vadd.f32 %v526, 1.0
    %v528 = vrcp.pop %v527
    %v529 = vmul.f32 1.0, %v528
    %v531 = vrot.slane %v438, 4
    %v533 = vunpack.c.l.bf16 %v531
    %v534 = vadd.f32 %v533, %v478
    %v535 = vxor.u32 %v534, 2147483648
    %v536 = vmul.f32 %v535, 1.442695
    %v537 = vpow.pop %v536
    %v538 = vadd.f32 %v537, 1.0
    %v539 = vrcp.pop %v538
    %v540 = vmul.f32 1.0, %v539
    %v541 = vadd.f32 %v517, %v60
    %v542 = vmul.f32 %v529, %v541
    %v543 = vunpack.c.l.bf16 %v439
    %v544 = vadd.f32 %v543, %v542
    %v545 = vtanh.pop %v544
    %v546 = vsub.f32 %v436, %v545
    %v547 = vmul.f32 %v540, %v546
    %v548 = vadd.f32 %v545, %v547
    %549 = vst [vmem:[#allocation2] sm:$0xff] %v548
    %v550 = vpack.c.bf16 %v548, %v548
    %v553 = vunpack.c.l.s4 1966171168
    %v554 = vunpack.c.0.s8 %v553
    %v555 = vlaneseq
    %v556 = vshrl.u32 %v555, 7
    %v557 = vsub.s32 %v554, %v556
    %v558 = vrot.slane %v550, %v557
    %v559 = vcombine.high %v558, %v558
    %v561 = vunpack.c.l.s4 1966171168
    %v562 = vunpack.c.0.s8 %v561
    %v563 = vlaneseq
    %v564 = vshrl.u32 %v563, 7
    %v565 = vsub.s32 %v562, %v564
    %v566 = vrot.slane %v558, %v565
    %v568 = vunpack.c.l.s4 1966171168
    %v569 = vunpack.c.0.s8 %v568
    %v570 = vlaneseq
    %v571 = vshrl.u32 %v570, 7
    %v572 = vsub.s32 %v569, %v571
    %v573 = vrot.slane %v559, %v572
    %v574 = vcombine.high %v566, %v566
    %v575 = vcombine.high %v573, %v573
    %v576 = vunpack.i.l.s16 %v566
    %v577 = vunpack.i.h.s16 %v566
    %v578 = vunpack.i.l.s16 %v573
    %v579 = vunpack.i.h.s16 %v573
    %v580 = vunpack.i.l.s16 %v574
    %v581 = vunpack.i.h.s16 %v574
    %v582 = vunpack.i.l.s16 %v575
    %v583 = vunpack.i.h.s16 %v575
    %v584 = vpack.i.b16 %v576, %v576
    %v585 = vpack.i.b16 %v577, %v577
    %v586 = vpack.i.b16 %v578, %v578
    %v587 = vpack.i.b16 %v579, %v579
    %v588 = vpack.i.b16 %v580, %v580
    %v589 = vpack.i.b16 %v581, %v581
    %v590 = vpack.i.b16 %v582, %v582
    %v591 = vpack.i.b16 %v583, %v583
    %v593 = vunpack.c.l.s4 286326784
    %v594 = vunpack.c.0.s8 %v593
    %v595 = vlaneseq
    %v596 = vshrl.u32 %v595, 7
    %v597 = vsub.s32 %v594, %v596
    %v598 = vrot.slane %v584, %v597
    %v600 = vunpack.c.l.s4 286326784
    %v601 = vunpack.c.0.s8 %v600
    %v602 = vlaneseq
    %v603 = vshrl.u32 %v602, 7
    %v604 = vsub.s32 %v601, %v603
    %v605 = vrot.slane %v585, %v604
    %v607 = vunpack.c.l.s4 286326784
    %v608 = vunpack.c.0.s8 %v607
    %v609 = vlaneseq
    %v610 = vshrl.u32 %v609, 7
    %v611 = vsub.s32 %v608, %v610
    %v612 = vrot.slane %v586, %v611
    %v614 = vunpack.c.l.s4 286326784
    %v615 = vunpack.c.0.s8 %v614
    %v616 = vlaneseq
    %v617 = vshrl.u32 %v616, 7
    %v618 = vsub.s32 %v615, %v617
    %v619 = vrot.slane %v587, %v618
    %v621 = vunpack.c.l.s4 286326784
    %v622 = vunpack.c.0.s8 %v621
    %v623 = vlaneseq
    %v624 = vshrl.u32 %v623, 7
    %v625 = vsub.s32 %v622, %v624
    %v626 = vrot.slane %v588, %v625
    %v628 = vunpack.c.l.s4 286326784
    %v629 = vunpack.c.0.s8 %v628
    %v630 = vlaneseq
    %v631 = vshrl.u32 %v630, 7
    %v632 = vsub.s32 %v629, %v631
    %v633 = vrot.slane %v589, %v632
    %v635 = vunpack.c.l.s4 286326784
    %v636 = vunpack.c.0.s8 %v635
    %v637 = vlaneseq
    %v638 = vshrl.u32 %v637, 7
    %v639 = vsub.s32 %v636, %v638
    %v640 = vrot.slane %v590, %v639
    %v642 = vunpack.c.l.s4 286326784
    %v643 = vunpack.c.0.s8 %v642
    %v644 = vlaneseq
    %v645 = vshrl.u32 %v644, 7
    %v646 = vsub.s32 %v643, %v645
    %v647 = vrot.slane %v591, %v646
    %vm656 = vsmask.f32 7938
    %vm657 = vmand %vm409, %vm656
    %v658 = vld [vmem:[%s3] sm:$0x1]
    %v659 = vsel %vm657, %v598, %v658
    %660 = vst [vmem:[%s3] sm:$0x1] %v659
    %v661 = vld [vmem:[%s3 + $0x4] sm:$0x1]
    %v662 = vsel %vm657, %v605, %v661
    %663 = vst [vmem:[%s3 + $0x4] sm:$0x1] %v662
    %v664 = vld [vmem:[%s3 + $0x8] sm:$0x1]
    %v665 = vsel %vm657, %v612, %v664
    %666 = vst [vmem:[%s3 + $0x8] sm:$0x1] %v665
    %v667 = vld [vmem:[%s3 + $0xc] sm:$0x1]
    %v668 = vsel %vm657, %v619, %v667
    %669 = vst [vmem:[%s3 + $0xc] sm:$0x1] %v668
    %v670 = vld [vmem:[%s3 + $0x10] sm:$0x1]
    %v671 = vsel %vm657, %v626, %v670
    %672 = vst [vmem:[%s3 + $0x10] sm:$0x1] %v671
    %v673 = vld [vmem:[%s3 + $0x14] sm:$0x1]
    %v674 = vsel %vm657, %v633, %v673
    %675 = vst [vmem:[%s3 + $0x14] sm:$0x1] %v674
    %v676 = vld [vmem:[%s3 + $0x18] sm:$0x1]
    %v677 = vsel %vm657, %v640, %v676
    %678 = vst [vmem:[%s3 + $0x18] sm:$0x1] %v677
    %v679 = vld [vmem:[%s3 + $0x1c] sm:$0x1]
    %v680 = vsel %vm657, %v647, %v679
    %681 = vst [vmem:[%s3 + $0x1c] sm:$0x1] %v680
    %v682 = vld [vmem:[#allocation2] sm:$0xff]
    %s683 = scalar_lea.vmem %s0, 24
    %v684 = vld [vmem:[%s683] sm:$0xff]
    %v685 = vld [vmem:[%s683 + $0x8] sm:$0xf]
    %v686 = vpack.c.bf16 %v682, %v682
    %687 = vmatprep.subr.bf16.mxu0 %v168
    %688 = vmatpush1.bf16.msra.mxu0 %v167
    %689 = vmatprep.subr.bf16.mxu0 %v165
    %690 = vmatpush1.bf16.msra.mxu0 %v164
    %691 = vmatprep.subr.bf16.mxu0 %v162
    %692 = vmatpush1.bf16.msra.mxu0 %v161
    %693 = vmatprep.subr.bf16.mxu0 %v159
    %694 = vmatpush1.bf16.msra.mxu0 %v158
    %695 = vmatprep.subr.bf16.mxu0 %v156
    %696 = vmatpush1.bf16.msra.mxu0 %v155
    %697 = vmatprep.subr.bf16.mxu0 %v153
    %698 = vmatpush1.bf16.msra.mxu0 %v152
    %699 = vmatprep.subr.bf16.mxu0 %v150
    %700 = vmatpush1.bf16.msra.mxu0 %v149
    %701 = vmatprep.subr.bf16.mxu0 %v147
    %702 = vmatpush1.bf16.msra.mxu0 %v146
    %703 = vmatprep.subr.bf16.mxu0 0
    %704 = vmatpush2.bf16.msra.mxu0 0
    %705 = vmatprep.subr.bf16.mxu0 0
    %706 = vmatpush2.bf16.msra.mxu0 0
    %707 = vmatprep.subr.bf16.mxu0 0
    %708 = vmatpush2.bf16.msra.mxu0 0
    %709 = vmatprep.subr.bf16.mxu0 0
    %710 = vmatpush2.bf16.msra.mxu0 0
    %711 = vmatprep.subr.bf16.mxu0 0
    %712 = vmatpush2.bf16.msra.mxu0 0
    %713 = vmatprep.subr.bf16.mxu0 0
    %714 = vmatpush2.bf16.msra.mxu0 0
    %715 = vmatprep.subr.bf16.mxu0 0
    %716 = vmatpush2.bf16.msra.mxu0 0
    %717 = vmatprep.subr.bf16.mxu0 0
    %718 = vmatpush2.bf16.msra.mxu0 0
    %719 = vmatprep.mubr.bf16.mxu0 0
    %720 = vmatmul.mubr.bf16.gmra.mxu0 %v686
    %v721 = vpop.f32.mrf.mxu0
    %v722 = vadd.f32 0.0, %v721
    %v723 = vpop.f32.mrf.mxu0
    %v724 = vadd.f32 0.0, %v723
    %v725 = vpop.f32.mrf.mxu0
    %v726 = vpop.f32.mrf.mxu0
    %727 = vdwg.mxu0
    %728 = vmatprep.subr.bf16.mxu0 0
    %729 = vmatpush1.bf16.msra.mxu0 %v169
    %730 = vmatprep.subr.bf16.mxu0 0
    %731 = vmatpush1.bf16.msra.mxu0 %v166
    %732 = vmatprep.subr.bf16.mxu0 0
    %733 = vmatpush1.bf16.msra.mxu0 %v163
    %734 = vmatprep.subr.bf16.mxu0 0
    %735 = vmatpush1.bf16.msra.mxu0 %v160
    %736 = vmatprep.subr.bf16.mxu0 0
    %737 = vmatpush1.bf16.msra.mxu0 %v157
    %738 = vmatprep.subr.bf16.mxu0 0
    %739 = vmatpush1.bf16.msra.mxu0 %v154
    %740 = vmatprep.subr.bf16.mxu0 0
    %741 = vmatpush1.bf16.msra.mxu0 %v151
    %742 = vmatprep.subr.bf16.mxu0 0
    %743 = vmatpush1.bf16.msra.mxu0 %v148
    %744 = vmatprep.subr.bf16.mxu0 0
    %745 = vmatpush2.bf16.msra.mxu0 0
    %746 = vmatprep.subr.bf16.mxu0 0
    %747 = vmatpush2.bf16.msra.mxu0 0
    %748 = vmatprep.subr.bf16.mxu0 0
    %749 = vmatpush2.bf16.msra.mxu0 0
    %750 = vmatprep.subr.bf16.mxu0 0
    %751 = vmatpush2.bf16.msra.mxu0 0
    %752 = vmatprep.subr.bf16.mxu0 0
    %753 = vmatpush2.bf16.msra.mxu0 0
    %754 = vmatprep.subr.bf16.mxu0 0
    %755 = vmatpush2.bf16.msra.mxu0 0
    %756 = vmatprep.subr.bf16.mxu0 0
    %757 = vmatpush2.bf16.msra.mxu0 0
    %758 = vmatprep.subr.bf16.mxu0 0
    %759 = vmatpush2.bf16.msra.mxu0 0
    %760 = vmatprep.mubr.bf16.mxu0 0
    %761 = vmatmul.mubr.bf16.gmra.mxu0 %v686
    %v762 = vpop.f32.mrf.mxu0
    %v763 = vadd.f32 0.0, %v762
    %v764 = vpop.f32.mrf.mxu0
    %v765 = vpop.f32.mrf.mxu0
    %v766 = vpop.f32.mrf.mxu0
    %767 = vdwg.mxu0
    %v768 = vunpack.c.l.bf16 %v684
    %v769 = vadd.f32 %v768, %v722
    %v770 = vxor.u32 %v769, 2147483648
    %v771 = vmul.f32 %v770, 1.442695
    %v772 = vpow.pop %v771
    %v773 = vadd.f32 %v772, 1.0
    %v774 = vrcp.pop %v773
    %v775 = vmul.f32 1.0, %v774
    %v777 = vrot.slane %v684, 4
    %v779 = vunpack.c.l.bf16 %v777
    %v780 = vadd.f32 %v779, %v724
    %v781 = vxor.u32 %v780, 2147483648
    %v782 = vmul.f32 %v781, 1.442695
    %v783 = vpow.pop %v782
    %v784 = vadd.f32 %v783, 1.0
    %v785 = vrcp.pop %v784
    %v786 = vmul.f32 1.0, %v785
    %v787 = vadd.f32 %v763, %v60
    %v788 = vmul.f32 %v775, %v787
    %v789 = vunpack.c.l.bf16 %v685
    %v790 = vadd.f32 %v789, %v788
    %v791 = vtanh.pop %v790
    %v792 = vsub.f32 %v682, %v791
    %v793 = vmul.f32 %v786, %v792
    %v794 = vadd.f32 %v791, %v793
    %795 = vst [vmem:[#allocation2] sm:$0xff] %v794
    %v796 = vpack.c.bf16 %v794, %v794
    %v799 = vunpack.c.l.s4 1966171168
    %v800 = vunpack.c.0.s8 %v799
    %v801 = vlaneseq
    %v802 = vshrl.u32 %v801, 7
    %v803 = vsub.s32 %v800, %v802
    %v804 = vrot.slane %v796, %v803
    %v805 = vcombine.high %v804, %v804
    %v807 = vunpack.c.l.s4 1966171168
    %v808 = vunpack.c.0.s8 %v807
    %v809 = vlaneseq
    %v810 = vshrl.u32 %v809, 7
    %v811 = vsub.s32 %v808, %v810
    %v812 = vrot.slane %v804, %v811
    %v814 = vunpack.c.l.s4 1966171168
    %v815 = vunpack.c.0.s8 %v814
    %v816 = vlaneseq
    %v817 = vshrl.u32 %v816, 7
    %v818 = vsub.s32 %v815, %v817
    %v819 = vrot.slane %v805, %v818
    %v820 = vcombine.high %v812, %v812
    %v821 = vcombine.high %v819, %v819
    %v822 = vunpack.i.l.s16 %v812
    %v823 = vunpack.i.h.s16 %v812
    %v824 = vunpack.i.l.s16 %v819
    %v825 = vunpack.i.h.s16 %v819
    %v826 = vunpack.i.l.s16 %v820
    %v827 = vunpack.i.h.s16 %v820
    %v828 = vunpack.i.l.s16 %v821
    %v829 = vunpack.i.h.s16 %v821
    %v830 = vpack.i.b16 %v822, %v822
    %v831 = vpack.i.b16 %v823, %v823
    %v832 = vpack.i.b16 %v824, %v824
    %v833 = vpack.i.b16 %v825, %v825
    %v834 = vpack.i.b16 %v826, %v826
    %v835 = vpack.i.b16 %v827, %v827
    %v836 = vpack.i.b16 %v828, %v828
    %v837 = vpack.i.b16 %v829, %v829
    %v839 = vunpack.c.l.s4 286326784
    %v840 = vunpack.c.0.s8 %v839
    %v841 = vlaneseq
    %v842 = vshrl.u32 %v841, 7
    %v843 = vsub.s32 %v840, %v842
    %v844 = vrot.slane %v830, %v843
    %v846 = vunpack.c.l.s4 286326784
    %v847 = vunpack.c.0.s8 %v846
    %v848 = vlaneseq
    %v849 = vshrl.u32 %v848, 7
    %v850 = vsub.s32 %v847, %v849
    %v851 = vrot.slane %v831, %v850
    %v853 = vunpack.c.l.s4 286326784
    %v854 = vunpack.c.0.s8 %v853
    %v855 = vlaneseq
    %v856 = vshrl.u32 %v855, 7
    %v857 = vsub.s32 %v854, %v856
    %v858 = vrot.slane %v832, %v857
    %v860 = vunpack.c.l.s4 286326784
    %v861 = vunpack.c.0.s8 %v860
    %v862 = vlaneseq
    %v863 = vshrl.u32 %v862, 7
    %v864 = vsub.s32 %v861, %v863
    %v865 = vrot.slane %v833, %v864
    %v867 = vunpack.c.l.s4 286326784
    %v868 = vunpack.c.0.s8 %v867
    %v869 = vlaneseq
    %v870 = vshrl.u32 %v869, 7
    %v871 = vsub.s32 %v868, %v870
    %v872 = vrot.slane %v834, %v871
    %v874 = vunpack.c.l.s4 286326784
    %v875 = vunpack.c.0.s8 %v874
    %v876 = vlaneseq
    %v877 = vshrl.u32 %v876, 7
    %v878 = vsub.s32 %v875, %v877
    %v879 = vrot.slane %v835, %v878
    %v881 = vunpack.c.l.s4 286326784
    %v882 = vunpack.c.0.s8 %v881
    %v883 = vlaneseq
    %v884 = vshrl.u32 %v883, 7
    %v885 = vsub.s32 %v882, %v884
    %v886 = vrot.slane %v836, %v885
    %v888 = vunpack.c.l.s4 286326784
    %v889 = vunpack.c.0.s8 %v888
    %v890 = vlaneseq
    %v891 = vshrl.u32 %v890, 7
    %v892 = vsub.s32 %v889, %v891
    %v893 = vrot.slane %v837, %v892
    %vm902 = vcmask 1041409
    %vm903 = vsmask.f32 1280
    %vm904 = vmand %vm902, %vm903
    %v905 = vld [vmem:[%s3] sm:$0x2]
    %v906 = vsel %vm904, %v844, %v905
    %907 = vst [vmem:[%s3] sm:$0x2] %v906
    %v908 = vld [vmem:[%s3 + $0x4] sm:$0x2]
    %v909 = vsel %vm904, %v851, %v908
    %910 = vst [vmem:[%s3 + $0x4] sm:$0x2] %v909
    %v911 = vld [vmem:[%s3 + $0x8] sm:$0x2]
    %v912 = vsel %vm904, %v858, %v911
    %913 = vst [vmem:[%s3 + $0x8] sm:$0x2] %v912
    %v914 = vld [vmem:[%s3 + $0xc] sm:$0x2]
    %v915 = vsel %vm904, %v865, %v914
    %916 = vst [vmem:[%s3 + $0xc] sm:$0x2] %v915
    %v917 = vld [vmem:[%s3 + $0x10] sm:$0x2]
    %v918 = vsel %vm904, %v872, %v917
    %919 = vst [vmem:[%s3 + $0x10] sm:$0x2] %v918
    %v920 = vld [vmem:[%s3 + $0x14] sm:$0x2]
    %v921 = vsel %vm904, %v879, %v920
    %922 = vst [vmem:[%s3 + $0x14] sm:$0x2] %v921
    %v923 = vld [vmem:[%s3 + $0x18] sm:$0x2]
    %v924 = vsel %vm904, %v886, %v923
    %925 = vst [vmem:[%s3 + $0x18] sm:$0x2] %v924
    %v926 = vld [vmem:[%s3 + $0x1c] sm:$0x2]
    %v927 = vsel %vm904, %v893, %v926
    %928 = vst [vmem:[%s3 + $0x1c] sm:$0x2] %v927
    %v929 = vld [vmem:[#allocation2] sm:$0xff]
    %s930 = scalar_lea.vmem %s0, 36
    %v931 = vld [vmem:[%s930] sm:$0xff]
    %v932 = vld [vmem:[%s930 + $0x8] sm:$0xf]
    %v933 = vpack.c.bf16 %v929, %v929
    %934 = vmatprep.subr.bf16.mxu0 %v168
    %935 = vmatpush1.bf16.msra.mxu0 %v167
    %936 = vmatprep.subr.bf16.mxu0 %v165
    %937 = vmatpush1.bf16.msra.mxu0 %v164
    %938 = vmatprep.subr.bf16.mxu0 %v162
    %939 = vmatpush1.bf16.msra.mxu0 %v161
    %940 = vmatprep.subr.bf16.mxu0 %v159
    %941 = vmatpush1.bf16.msra.mxu0 %v158
    %942 = vmatprep.subr.bf16.mxu0 %v156
    %943 = vmatpush1.bf16.msra.mxu0 %v155
    %944 = vmatprep.subr.bf16.mxu0 %v153
    %945 = vmatpush1.bf16.msra.mxu0 %v152
    %946 = vmatprep.subr.bf16.mxu0 %v150
    %947 = vmatpush1.bf16.msra.mxu0 %v149
    %948 = vmatprep.subr.bf16.mxu0 %v147
    %949 = vmatpush1.bf16.msra.mxu0 %v146
    %950 = vmatprep.subr.bf16.mxu0 0
    %951 = vmatpush2.bf16.msra.mxu0 0
    %952 = vmatprep.subr.bf16.mxu0 0
    %953 = vmatpush2.bf16.msra.mxu0 0
    %954 = vmatprep.subr.bf16.mxu0 0
    %955 = vmatpush2.bf16.msra.mxu0 0
    %956 = vmatprep.subr.bf16.mxu0 0
    %957 = vmatpush2.bf16.msra.mxu0 0
    %958 = vmatprep.subr.bf16.mxu0 0
    %959 = vmatpush2.bf16.msra.mxu0 0
    %960 = vmatprep.subr.bf16.mxu0 0
    %961 = vmatpush2.bf16.msra.mxu0 0
    %962 = vmatprep.subr.bf16.mxu0 0
    %963 = vmatpush2.bf16.msra.mxu0 0
    %964 = vmatprep.subr.bf16.mxu0 0
    %965 = vmatpush2.bf16.msra.mxu0 0
    %966 = vmatprep.mubr.bf16.mxu0 0
    %967 = vmatmul.mubr.bf16.gmra.mxu0 %v933
    %v968 = vpop.f32.mrf.mxu0
    %v969 = vadd.f32 0.0, %v968
    %v970 = vpop.f32.mrf.mxu0
    %v971 = vadd.f32 0.0, %v970
    %v972 = vpop.f32.mrf.mxu0
    %v973 = vpop.f32.mrf.mxu0
    %974 = vdwg.mxu0
    %975 = vmatprep.subr.bf16.mxu0 0
    %976 = vmatpush1.bf16.msra.mxu0 %v169
    %977 = vmatprep.subr.bf16.mxu0 0
    %978 = vmatpush1.bf16.msra.mxu0 %v166
    %979 = vmatprep.subr.bf16.mxu0 0
    %980 = vmatpush1.bf16.msra.mxu0 %v163
    %981 = vmatprep.subr.bf16.mxu0 0
    %982 = vmatpush1.bf16.msra.mxu0 %v160
    %983 = vmatprep.subr.bf16.mxu0 0
    %984 = vmatpush1.bf16.msra.mxu0 %v157
    %985 = vmatprep.subr.bf16.mxu0 0
    %986 = vmatpush1.bf16.msra.mxu0 %v154
    %987 = vmatprep.subr.bf16.mxu0 0
    %988 = vmatpush1.bf16.msra.mxu0 %v151
    %989 = vmatprep.subr.bf16.mxu0 0
    %990 = vmatpush1.bf16.msra.mxu0 %v148
    %991 = vmatprep.subr.bf16.mxu0 0
    %992 = vmatpush2.bf16.msra.mxu0 0
    %993 = vmatprep.subr.bf16.mxu0 0
    %994 = vmatpush2.bf16.msra.mxu0 0
    %995 = vmatprep.subr.bf16.mxu0 0
    %996 = vmatpush2.bf16.msra.mxu0 0
    %997 = vmatprep.subr.bf16.mxu0 0
    %998 = vmatpush2.bf16.msra.mxu0 0
    %999 = vmatprep.subr.bf16.mxu0 0
    %1000 = vmatpush2.bf16.msra.mxu0 0
    %1001 = vmatprep.subr.bf16.mxu0 0
    %1002 = vmatpush2.bf16.msra.mxu0 0
    %1003 = vmatprep.subr.bf16.mxu0 0
    %1004 = vmatpush2.bf16.msra.mxu0 0
    %1005 = vmatprep.subr.bf16.mxu0 0
    %1006 = vmatpush2.bf16.msra.mxu0 0
    %1007 = vmatprep.mubr.bf16.mxu0 0
    %1008 = vmatmul.mubr.bf16.gmra.mxu0 %v933
    %v1009 = vpop.f32.mrf.mxu0
    %v1010 = vadd.f32 0.0, %v1009
    %v1011 = vpop.f32.mrf.mxu0
    %v1012 = vpop.f32.mrf.mxu0
    %v1013 = vpop.f32.mrf.mxu0
    %1014 = vdwg.mxu0
    %v1015 = vunpack.c.l.bf16 %v931
    %v1016 = vadd.f32 %v1015, %v969
    %v1017 = vxor.u32 %v1016, 2147483648
    %v1018 = vmul.f32 %v1017, 1.442695
    %v1019 = vpow.pop %v1018
    %v1020 = vadd.f32 %v1019, 1.0
    %v1021 = vrcp.pop %v1020
    %v1022 = vmul.f32 1.0, %v1021
    %v1024 = vrot.slane %v931, 4
    %v1026 = vunpack.c.l.bf16 %v1024
    %v1027 = vadd.f32 %v1026, %v971
    %v1028 = vxor.u32 %v1027, 2147483648
    %v1029 = vmul.f32 %v1028, 1.442695
    %v1030 = vpow.pop %v1029
    %v1031 = vadd.f32 %v1030, 1.0
    %v1032 = vrcp.pop %v1031
    %v1033 = vmul.f32 1.0, %v1032
    %v1034 = vadd.f32 %v1010, %v60
    %v1035 = vmul.f32 %v1022, %v1034
    %v1036 = vunpack.c.l.bf16 %v932
    %v1037 = vadd.f32 %v1036, %v1035
    %v1038 = vtanh.pop %v1037
    %v1039 = vsub.f32 %v929, %v1038
    %v1040 = vmul.f32 %v1033, %v1039
    %v1041 = vadd.f32 %v1038, %v1040
    %1042 = vst [vmem:[#allocation2] sm:$0xff] %v1041
    %v1043 = vpack.c.bf16 %v1041, %v1041
    %v1046 = vunpack.c.l.s4 1966171168
    %v1047 = vunpack.c.0.s8 %v1046
    %v1048 = vlaneseq
    %v1049 = vshrl.u32 %v1048, 7
    %v1050 = vsub.s32 %v1047, %v1049
    %v1051 = vrot.slane %v1043, %v1050
    %v1052 = vcombine.high %v1051, %v1051
    %v1054 = vunpack.c.l.s4 1966171168
    %v1055 = vunpack.c.0.s8 %v1054
    %v1056 = vlaneseq
    %v1057 = vshrl.u32 %v1056, 7
    %v1058 = vsub.s32 %v1055, %v1057
    %v1059 = vrot.slane %v1051, %v1058
    %v1061 = vunpack.c.l.s4 1966171168
    %v1062 = vunpack.c.0.s8 %v1061
    %v1063 = vlaneseq
    %v1064 = vshrl.u32 %v1063, 7
    %v1065 = vsub.s32 %v1062, %v1064
    %v1066 = vrot.slane %v1052, %v1065
    %v1067 = vcombine.high %v1059, %v1059
    %v1068 = vcombine.high %v1066, %v1066
    %v1069 = vunpack.i.l.s16 %v1059
    %v1070 = vunpack.i.h.s16 %v1059
    %v1071 = vunpack.i.l.s16 %v1066
    %v1072 = vunpack.i.h.s16 %v1066
    %v1073 = vunpack.i.l.s16 %v1067
    %v1074 = vunpack.i.h.s16 %v1067
    %v1075 = vunpack.i.l.s16 %v1068
    %v1076 = vunpack.i.h.s16 %v1068
    %v1077 = vpack.i.b16 %v1069, %v1069
    %v1078 = vpack.i.b16 %v1070, %v1070
    %v1079 = vpack.i.b16 %v1071, %v1071
    %v1080 = vpack.i.b16 %v1072, %v1072
    %v1081 = vpack.i.b16 %v1073, %v1073
    %v1082 = vpack.i.b16 %v1074, %v1074
    %v1083 = vpack.i.b16 %v1075, %v1075
    %v1084 = vpack.i.b16 %v1076, %v1076
    %v1086 = vunpack.c.l.s4 286326784
    %v1087 = vunpack.c.0.s8 %v1086
    %v1088 = vlaneseq
    %v1089 = vshrl.u32 %v1088, 7
    %v1090 = vsub.s32 %v1087, %v1089
    %v1091 = vrot.slane %v1077, %v1090
    %v1093 = vunpack.c.l.s4 286326784
    %v1094 = vunpack.c.0.s8 %v1093
    %v1095 = vlaneseq
    %v1096 = vshrl.u32 %v1095, 7
    %v1097 = vsub.s32 %v1094, %v1096
    %v1098 = vrot.slane %v1078, %v1097
    %v1100 = vunpack.c.l.s4 286326784
    %v1101 = vunpack.c.0.s8 %v1100
    %v1102 = vlaneseq
    %v1103 = vshrl.u32 %v1102, 7
    %v1104 = vsub.s32 %v1101, %v1103
    %v1105 = vrot.slane %v1079, %v1104
    %v1107 = vunpack.c.l.s4 286326784
    %v1108 = vunpack.c.0.s8 %v1107
    %v1109 = vlaneseq
    %v1110 = vshrl.u32 %v1109, 7
    %v1111 = vsub.s32 %v1108, %v1110
    %v1112 = vrot.slane %v1080, %v1111
    %v1114 = vunpack.c.l.s4 286326784
    %v1115 = vunpack.c.0.s8 %v1114
    %v1116 = vlaneseq
    %v1117 = vshrl.u32 %v1116, 7
    %v1118 = vsub.s32 %v1115, %v1117
    %v1119 = vrot.slane %v1081, %v1118
    %v1121 = vunpack.c.l.s4 286326784
    %v1122 = vunpack.c.0.s8 %v1121
    %v1123 = vlaneseq
    %v1124 = vshrl.u32 %v1123, 7
    %v1125 = vsub.s32 %v1122, %v1124
    %v1126 = vrot.slane %v1082, %v1125
    %v1128 = vunpack.c.l.s4 286326784
    %v1129 = vunpack.c.0.s8 %v1128
    %v1130 = vlaneseq
    %v1131 = vshrl.u32 %v1130, 7
    %v1132 = vsub.s32 %v1129, %v1131
    %v1133 = vrot.slane %v1083, %v1132
    %v1135 = vunpack.c.l.s4 286326784
    %v1136 = vunpack.c.0.s8 %v1135
    %v1137 = vlaneseq
    %v1138 = vshrl.u32 %v1137, 7
    %v1139 = vsub.s32 %v1136, %v1138
    %v1140 = vrot.slane %v1084, %v1139
    %vm1149 = vsmask.f32 7942
    %vm1150 = vmand %vm902, %vm1149
    %v1151 = vld [vmem:[%s3] sm:$0x2]
    %v1152 = vsel %vm1150, %v1091, %v1151
    %1153 = vst [vmem:[%s3] sm:$0x2] %v1152
    %v1154 = vld [vmem:[%s3 + $0x4] sm:$0x2]
    %v1155 = vsel %vm1150, %v1098, %v1154
    %1156 = vst [vmem:[%s3 + $0x4] sm:$0x2] %v1155
    %v1157 = vld [vmem:[%s3 + $0x8] sm:$0x2]
    %v1158 = vsel %vm1150, %v1105, %v1157
    %1159 = vst [vmem:[%s3 + $0x8] sm:$0x2] %v1158
    %v1160 = vld [vmem:[%s3 + $0xc] sm:$0x2]
    %v1161 = vsel %vm1150, %v1112, %v1160
    %1162 = vst [vmem:[%s3 + $0xc] sm:$0x2] %v1161
    %v1163 = vld [vmem:[%s3 + $0x10] sm:$0x2]
    %v1164 = vsel %vm1150, %v1119, %v1163
    %1165 = vst [vmem:[%s3 + $0x10] sm:$0x2] %v1164
    %v1166 = vld [vmem:[%s3 + $0x14] sm:$0x2]
    %v1167 = vsel %vm1150, %v1126, %v1166
    %1168 = vst [vmem:[%s3 + $0x14] sm:$0x2] %v1167
    %v1169 = vld [vmem:[%s3 + $0x18] sm:$0x2]
    %v1170 = vsel %vm1150, %v1133, %v1169
    %1171 = vst [vmem:[%s3 + $0x18] sm:$0x2] %v1170
    %v1172 = vld [vmem:[%s3 + $0x1c] sm:$0x2]
    %v1173 = vsel %vm1150, %v1140, %v1172
    %1174 = vst [vmem:[%s3 + $0x1c] sm:$0x2] %v1173
    %v1175 = vld [vmem:[#allocation2] sm:$0xff]
    %s1176 = scalar_lea.vmem %s0, 48
    %v1177 = vld [vmem:[%s1176] sm:$0xff]
    %v1178 = vld [vmem:[%s1176 + $0x8] sm:$0xf]
    %v1179 = vpack.c.bf16 %v1175, %v1175
    %1180 = vmatprep.subr.bf16.mxu0 %v168
    %1181 = vmatpush1.bf16.msra.mxu0 %v167
    %1182 = vmatprep.subr.bf16.mxu0 %v165
    %1183 = vmatpush1.bf16.msra.mxu0 %v164
    %1184 = vmatprep.subr.bf16.mxu0 %v162
    %1185 = vmatpush1.bf16.msra.mxu0 %v161
    %1186 = vmatprep.subr.bf16.mxu0 %v159
    %1187 = vmatpush1.bf16.msra.mxu0 %v158
    %1188 = vmatprep.subr.bf16.mxu0 %v156
    %1189 = vmatpush1.bf16.msra.mxu0 %v155
    %1190 = vmatprep.subr.bf16.mxu0 %v153
    %1191 = vmatpush1.bf16.msra.mxu0 %v152
    %1192 = vmatprep.subr.bf16.mxu0 %v150
    %1193 = vmatpush1.bf16.msra.mxu0 %v149
    %1194 = vmatprep.subr.bf16.mxu0 %v147
    %1195 = vmatpush1.bf16.msra.mxu0 %v146
    %1196 = vmatprep.subr.bf16.mxu0 0
    %1197 = vmatpush2.bf16.msra.mxu0 0
    %1198 = vmatprep.subr.bf16.mxu0 0
    %1199 = vmatpush2.bf16.msra.mxu0 0
    %1200 = vmatprep.subr.bf16.mxu0 0
    %1201 = vmatpush2.bf16.msra.mxu0 0
    %1202 = vmatprep.subr.bf16.mxu0 0
    %1203 = vmatpush2.bf16.msra.mxu0 0
    %1204 = vmatprep.subr.bf16.mxu0 0
    %1205 = vmatpush2.bf16.msra.mxu0 0
    %1206 = vmatprep.subr.bf16.mxu0 0
    %1207 = vmatpush2.bf16.msra.mxu0 0
    %1208 = vmatprep.subr.bf16.mxu0 0
    %1209 = vmatpush2.bf16.msra.mxu0 0
    %1210 = vmatprep.subr.bf16.mxu0 0
    %1211 = vmatpush2.bf16.msra.mxu0 0
    %1212 = vmatprep.mubr.bf16.mxu0 0
    %1213 = vmatmul.mubr.bf16.gmra.mxu0 %v1179
    %v1214 = vpop.f32.mrf.mxu0
    %v1215 = vadd.f32 0.0, %v1214
    %v1216 = vpop.f32.mrf.mxu0
    %v1217 = vadd.f32 0.0, %v1216
    %v1218 = vpop.f32.mrf.mxu0
    %v1219 = vpop.f32.mrf.mxu0
    %1220 = vdwg.mxu0
    %1221 = vmatprep.subr.bf16.mxu0 0
    %1222 = vmatpush1.bf16.msra.mxu0 %v169
    %1223 = vmatprep.subr.bf16.mxu0 0
    %1224 = vmatpush1.bf16.msra.mxu0 %v166
    %1225 = vmatprep.subr.bf16.mxu0 0
    %1226 = vmatpush1.bf16.msra.mxu0 %v163
    %1227 = vmatprep.subr.bf16.mxu0 0
    %1228 = vmatpush1.bf16.msra.mxu0 %v160
    %1229 = vmatprep.subr.bf16.mxu0 0
    %1230 = vmatpush1.bf16.msra.mxu0 %v157
    %1231 = vmatprep.subr.bf16.mxu0 0
    %1232 = vmatpush1.bf16.msra.mxu0 %v154
    %1233 = vmatprep.subr.bf16.mxu0 0
    %1234 = vmatpush1.bf16.msra.mxu0 %v151
    %1235 = vmatprep.subr.bf16.mxu0 0
    %1236 = vmatpush1.bf16.msra.mxu0 %v148
    %1237 = vmatprep.subr.bf16.mxu0 0
    %1238 = vmatpush2.bf16.msra.mxu0 0
    %1239 = vmatprep.subr.bf16.mxu0 0
    %1240 = vmatpush2.bf16.msra.mxu0 0
    %1241 = vmatprep.subr.bf16.mxu0 0
    %1242 = vmatpush2.bf16.msra.mxu0 0
    %1243 = vmatprep.subr.bf16.mxu0 0
    %1244 = vmatpush2.bf16.msra.mxu0 0
    %1245 = vmatprep.subr.bf16.mxu0 0
    %1246 = vmatpush2.bf16.msra.mxu0 0
    %1247 = vmatprep.subr.bf16.mxu0 0
    %1248 = vmatpush2.bf16.msra.mxu0 0
    %1249 = vmatprep.subr.bf16.mxu0 0
    %1250 = vmatpush2.bf16.msra.mxu0 0
    %1251 = vmatprep.subr.bf16.mxu0 0
    %1252 = vmatpush2.bf16.msra.mxu0 0
    %1253 = vmatprep.mubr.bf16.mxu0 0
    %1254 = vmatmul.mubr.bf16.gmra.mxu0 %v1179
    %v1255 = vpop.f32.mrf.mxu0
    %v1256 = vadd.f32 0.0, %v1255
    %v1257 = vpop.f32.mrf.mxu0
    %v1258 = vpop.f32.mrf.mxu0
    %v1259 = vpop.f32.mrf.mxu0
    %1260 = vdwg.mxu0
    %v1261 = vunpack.c.l.bf16 %v1177
    %v1262 = vadd.f32 %v1261, %v1215
    %v1263 = vxor.u32 %v1262, 2147483648
    %v1264 = vmul.f32 %v1263, 1.442695
    %v1265 = vpow.pop %v1264
    %v1266 = vadd.f32 %v1265, 1.0
    %v1267 = vrcp.pop %v1266
    %v1268 = vmul.f32 1.0, %v1267
    %v1270 = vrot.slane %v1177, 4
    %v1272 = vunpack.c.l.bf16 %v1270
    %v1273 = vadd.f32 %v1272, %v1217
    %v1274 = vxor.u32 %v1273, 2147483648
    %v1275 = vmul.f32 %v1274, 1.442695
    %v1276 = vpow.pop %v1275
    %v1277 = vadd.f32 %v1276, 1.0
    %v1278 = vrcp.pop %v1277
    %v1279 = vmul.f32 1.0, %v1278
    %v1280 = vadd.f32 %v1256, %v60
    %v1281 = vmul.f32 %v1268, %v1280
    %v1282 = vunpack.c.l.bf16 %v1178
    %v1283 = vadd.f32 %v1282, %v1281
    %v1284 = vtanh.pop %v1283
    %v1285 = vsub.f32 %v1175, %v1284
    %v1286 = vmul.f32 %v1279, %v1285
    %v1287 = vadd.f32 %v1284, %v1286
    %1288 = vst [vmem:[#allocation2] sm:$0xff] %v1287
    %v1289 = vpack.c.bf16 %v1287, %v1287
    %v1292 = vunpack.c.l.s4 1966171168
    %v1293 = vunpack.c.0.s8 %v1292
    %v1294 = vlaneseq
    %v1295 = vshrl.u32 %v1294, 7
    %v1296 = vsub.s32 %v1293, %v1295
    %v1297 = vrot.slane %v1289, %v1296
    %v1298 = vcombine.high %v1297, %v1297
    %v1300 = vunpack.c.l.s4 1966171168
    %v1301 = vunpack.c.0.s8 %v1300
    %v1302 = vlaneseq
    %v1303 = vshrl.u32 %v1302, 7
    %v1304 = vsub.s32 %v1301, %v1303
    %v1305 = vrot.slane %v1297, %v1304
    %v1307 = vunpack.c.l.s4 1966171168
    %v1308 = vunpack.c.0.s8 %v1307
    %v1309 = vlaneseq
    %v1310 = vshrl.u32 %v1309, 7
    %v1311 = vsub.s32 %v1308, %v1310
    %v1312 = vrot.slane %v1298, %v1311
    %v1313 = vcombine.high %v1305, %v1305
    %v1314 = vcombine.high %v1312, %v1312
    %v1315 = vunpack.i.l.s16 %v1305
    %v1316 = vunpack.i.h.s16 %v1305
    %v1317 = vunpack.i.l.s16 %v1312
    %v1318 = vunpack.i.h.s16 %v1312
    %v1319 = vunpack.i.l.s16 %v1313
    %v1320 = vunpack.i.h.s16 %v1313
    %v1321 = vunpack.i.l.s16 %v1314
    %v1322 = vunpack.i.h.s16 %v1314
    %v1323 = vpack.i.b16 %v1315, %v1315
    %v1324 = vpack.i.b16 %v1316, %v1316
    %v1325 = vpack.i.b16 %v1317, %v1317
    %v1326 = vpack.i.b16 %v1318, %v1318
    %v1327 = vpack.i.b16 %v1319, %v1319
    %v1328 = vpack.i.b16 %v1320, %v1320
    %v1329 = vpack.i.b16 %v1321, %v1321
    %v1330 = vpack.i.b16 %v1322, %v1322
    %v1332 = vunpack.c.l.s4 286326784
    %v1333 = vunpack.c.0.s8 %v1332
    %v1334 = vlaneseq
    %v1335 = vshrl.u32 %v1334, 7
    %v1336 = vsub.s32 %v1333, %v1335
    %v1337 = vrot.slane %v1323, %v1336
    %v1339 = vunpack.c.l.s4 286326784
    %v1340 = vunpack.c.0.s8 %v1339
    %v1341 = vlaneseq
    %v1342 = vshrl.u32 %v1341, 7
    %v1343 = vsub.s32 %v1340, %v1342
    %v1344 = vrot.slane %v1324, %v1343
    %v1346 = vunpack.c.l.s4 286326784
    %v1347 = vunpack.c.0.s8 %v1346
    %v1348 = vlaneseq
    %v1349 = vshrl.u32 %v1348, 7
    %v1350 = vsub.s32 %v1347, %v1349
    %v1351 = vrot.slane %v1325, %v1350
    %v1353 = vunpack.c.l.s4 286326784
    %v1354 = vunpack.c.0.s8 %v1353
    %v1355 = vlaneseq
    %v1356 = vshrl.u32 %v1355, 7
    %v1357 = vsub.s32 %v1354, %v1356
    %v1358 = vrot.slane %v1326, %v1357
    %v1360 = vunpack.c.l.s4 286326784
    %v1361 = vunpack.c.0.s8 %v1360
    %v1362 = vlaneseq
    %v1363 = vshrl.u32 %v1362, 7
    %v1364 = vsub.s32 %v1361, %v1363
    %v1365 = vrot.slane %v1327, %v1364
    %v1367 = vunpack.c.l.s4 286326784
    %v1368 = vunpack.c.0.s8 %v1367
    %v1369 = vlaneseq
    %v1370 = vshrl.u32 %v1369, 7
    %v1371 = vsub.s32 %v1368, %v1370
    %v1372 = vrot.slane %v1328, %v1371
    %v1374 = vunpack.c.l.s4 286326784
    %v1375 = vunpack.c.0.s8 %v1374
    %v1376 = vlaneseq
    %v1377 = vshrl.u32 %v1376, 7
    %v1378 = vsub.s32 %v1375, %v1377
    %v1379 = vrot.slane %v1329, %v1378
    %v1381 = vunpack.c.l.s4 286326784
    %v1382 = vunpack.c.0.s8 %v1381
    %v1383 = vlaneseq
    %v1384 = vshrl.u32 %v1383, 7
    %v1385 = vsub.s32 %v1382, %v1384
    %v1386 = vrot.slane %v1330, %v1385
    %vm1395 = vcmask 1042434
    %vm1396 = vsmask.f32 2304
    %vm1397 = vmand %vm1395, %vm1396
    %v1398 = vld [vmem:[%s3] sm:$0x4]
    %v1399 = vsel %vm1397, %v1337, %v1398
    %1400 = vst [vmem:[%s3] sm:$0x4] %v1399
    %v1401 = vld [vmem:[%s3 + $0x4] sm:$0x4]
    %v1402 = vsel %vm1397, %v1344, %v1401
    %1403 = vst [vmem:[%s3 + $0x4] sm:$0x4] %v1402
    %v1404 = vld [vmem:[%s3 + $0x8] sm:$0x4]
    %v1405 = vsel %vm1397, %v1351, %v1404
    %1406 = vst [vmem:[%s3 + $0x8] sm:$0x4] %v1405
    %v1407 = vld [vmem:[%s3 + $0xc] sm:$0x4]
    %v1408 = vsel %vm1397, %v1358, %v1407
    %1409 = vst [vmem:[%s3 + $0xc] sm:$0x4] %v1408
    %v1410 = vld [vmem:[%s3 + $0x10] sm:$0x4]
    %v1411 = vsel %vm1397, %v1365, %v1410
    %1412 = vst [vmem:[%s3 + $0x10] sm:$0x4] %v1411
    %v1413 = vld [vmem:[%s3 + $0x14] sm:$0x4]
    %v1414 = vsel %vm1397, %v1372, %v1413
    %1415 = vst [vmem:[%s3 + $0x14] sm:$0x4] %v1414
    %v1416 = vld [vmem:[%s3 + $0x18] sm:$0x4]
    %v1417 = vsel %vm1397, %v1379, %v1416
    %1418 = vst [vmem:[%s3 + $0x18] sm:$0x4] %v1417
    %v1419 = vld [vmem:[%s3 + $0x1c] sm:$0x4]
    %v1420 = vsel %vm1397, %v1386, %v1419
    %1421 = vst [vmem:[%s3 + $0x1c] sm:$0x4] %v1420
    %v1422 = vld [vmem:[#allocation2] sm:$0xff]
    %s1423 = scalar_lea.vmem %s0, 60
    %v1424 = vld [vmem:[%s1423] sm:$0xff]
    %v1425 = vld [vmem:[%s1423 + $0x8] sm:$0xf]
    %v1426 = vpack.c.bf16 %v1422, %v1422
    %1427 = vmatprep.subr.bf16.mxu0 %v168
    %1428 = vmatpush1.bf16.msra.mxu0 %v167
    %1429 = vmatprep.subr.bf16.mxu0 %v165
    %1430 = vmatpush1.bf16.msra.mxu0 %v164
    %1431 = vmatprep.subr.bf16.mxu0 %v162
    %1432 = vmatpush1.bf16.msra.mxu0 %v161
    %1433 = vmatprep.subr.bf16.mxu0 %v159
    %1434 = vmatpush1.bf16.msra.mxu0 %v158
    %1435 = vmatprep.subr.bf16.mxu0 %v156
    %1436 = vmatpush1.bf16.msra.mxu0 %v155
    %1437 = vmatprep.subr.bf16.mxu0 %v153
    %1438 = vmatpush1.bf16.msra.mxu0 %v152
    %1439 = vmatprep.subr.bf16.mxu0 %v150
    %1440 = vmatpush1.bf16.msra.mxu0 %v149
    %1441 = vmatprep.subr.bf16.mxu0 %v147
    %1442 = vmatpush1.bf16.msra.mxu0 %v146
    %1443 = vmatprep.subr.bf16.mxu0 0
    %1444 = vmatpush2.bf16.msra.mxu0 0
    %1445 = vmatprep.subr.bf16.mxu0 0
    %1446 = vmatpush2.bf16.msra.mxu0 0
    %1447 = vmatprep.subr.bf16.mxu0 0
    %1448 = vmatpush2.bf16.msra.mxu0 0
    %1449 = vmatprep.subr.bf16.mxu0 0
    %1450 = vmatpush2.bf16.msra.mxu0 0
    %1451 = vmatprep.subr.bf16.mxu0 0
    %1452 = vmatpush2.bf16.msra.mxu0 0
    %1453 = vmatprep.subr.bf16.mxu0 0
    %1454 = vmatpush2.bf16.msra.mxu0 0
    %1455 = vmatprep.subr.bf16.mxu0 0
    %1456 = vmatpush2.bf16.msra.mxu0 0
    %1457 = vmatprep.subr.bf16.mxu0 0
    %1458 = vmatpush2.bf16.msra.mxu0 0
    %1459 = vmatprep.mubr.bf16.mxu0 0
    %1460 = vmatmul.mubr.bf16.gmra.mxu0 %v1426
    %v1461 = vpop.f32.mrf.mxu0
    %v1462 = vadd.f32 0.0, %v1461
    %v1463 = vpop.f32.mrf.mxu0
    %v1464 = vadd.f32 0.0, %v1463
    %v1465 = vpop.f32.mrf.mxu0
    %v1466 = vpop.f32.mrf.mxu0
    %1467 = vdwg.mxu0
    %1468 = vmatprep.subr.bf16.mxu0 0
    %1469 = vmatpush1.bf16.msra.mxu0 %v169
    %1470 = vmatprep.subr.bf16.mxu0 0
    %1471 = vmatpush1.bf16.msra.mxu0 %v166
    %1472 = vmatprep.subr.bf16.mxu0 0
    %1473 = vmatpush1.bf16.msra.mxu0 %v163
    %1474 = vmatprep.subr.bf16.mxu0 0
    %1475 = vmatpush1.bf16.msra.mxu0 %v160
    %1476 = vmatprep.subr.bf16.mxu0 0
    %1477 = vmatpush1.bf16.msra.mxu0 %v157
    %1478 = vmatprep.subr.bf16.mxu0 0
    %1479 = vmatpush1.bf16.msra.mxu0 %v154
    %1480 = vmatprep.subr.bf16.mxu0 0
    %1481 = vmatpush1.bf16.msra.mxu0 %v151
    %1482 = vmatprep.subr.bf16.mxu0 0
    %1483 = vmatpush1.bf16.msra.mxu0 %v148
    %1484 = vmatprep.subr.bf16.mxu0 0
    %1485 = vmatpush2.bf16.msra.mxu0 0
    %1486 = vmatprep.subr.bf16.mxu0 0
    %1487 = vmatpush2.bf16.msra.mxu0 0
    %1488 = vmatprep.subr.bf16.mxu0 0
    %1489 = vmatpush2.bf16.msra.mxu0 0
    %1490 = vmatprep.subr.bf16.mxu0 0
    %1491 = vmatpush2.bf16.msra.mxu0 0
    %1492 = vmatprep.subr.bf16.mxu0 0
    %1493 = vmatpush2.bf16.msra.mxu0 0
    %1494 = vmatprep.subr.bf16.mxu0 0
    %1495 = vmatpush2.bf16.msra.mxu0 0
    %1496 = vmatprep.subr.bf16.mxu0 0
    %1497 = vmatpush2.bf16.msra.mxu0 0
    %1498 = vmatprep.subr.bf16.mxu0 0
    %1499 = vmatpush2.bf16.msra.mxu0 0
    %1500 = vmatprep.mubr.bf16.mxu0 0
    %1501 = vmatmul.mubr.bf16.gmra.mxu0 %v1426
    %v1502 = vpop.f32.mrf.mxu0
    %v1503 = vadd.f32 0.0, %v1502
    %v1504 = vpop.f32.mrf.mxu0
    %v1505 = vpop.f32.mrf.mxu0
    %v1506 = vpop.f32.mrf.mxu0
    %1507 = vdwg.mxu0
    %v1508 = vunpack.c.l.bf16 %v1424
    %v1509 = vadd.f32 %v1508, %v1462
    %v1510 = vxor.u32 %v1509, 2147483648
    %v1511 = vmul.f32 %v1510, 1.442695
    %v1512 = vpow.pop %v1511
    %v1513 = vadd.f32 %v1512, 1.0
    %v1514 = vrcp.pop %v1513
    %v1515 = vmul.f32 1.0, %v1514
    %v1517 = vrot.slane %v1424, 4
    %v1519 = vunpack.c.l.bf16 %v1517
    %v1520 = vadd.f32 %v1519, %v1464
    %v1521 = vxor.u32 %v1520, 2147483648
    %v1522 = vmul.f32 %v1521, 1.442695
    %v1523 = vpow.pop %v1522
    %v1524 = vadd.f32 %v1523, 1.0
    %v1525 = vrcp.pop %v1524
    %v1526 = vmul.f32 1.0, %v1525
    %v1527 = vadd.f32 %v1503, %v60
    %v1528 = vmul.f32 %v1515, %v1527
    %v1529 = vunpack.c.l.bf16 %v1425
    %v1530 = vadd.f32 %v1529, %v1528
    %v1531 = vtanh.pop %v1530
    %v1532 = vsub.f32 %v1422, %v1531
    %v1533 = vmul.f32 %v1526, %v1532
    %v1534 = vadd.f32 %v1531, %v1533
    %1535 = vst [vmem:[#allocation2] sm:$0xff] %v1534
    %v1536 = vpack.c.bf16 %v1534, %v1534
    %v1539 = vunpack.c.l.s4 1966171168
    %v1540 = vunpack.c.0.s8 %v1539
    %v1541 = vlaneseq
    %v1542 = vshrl.u32 %v1541, 7
    %v1543 = vsub.s32 %v1540, %v1542
    %v1544 = vrot.slane %v1536, %v1543
    %v1545 = vcombine.high %v1544, %v1544
    %v1547 = vunpack.c.l.s4 1966171168
    %v1548 = vunpack.c.0.s8 %v1547
    %v1549 = vlaneseq
    %v1550 = vshrl.u32 %v1549, 7
    %v1551 = vsub.s32 %v1548, %v1550
    %v1552 = vrot.slane %v1544, %v1551
    %v1554 = vunpack.c.l.s4 1966171168
    %v1555 = vunpack.c.0.s8 %v1554
    %v1556 = vlaneseq
    %v1557 = vshrl.u32 %v1556, 7
    %v1558 = vsub.s32 %v1555, %v1557
    %v1559 = vrot.slane %v1545, %v1558
    %v1560 = vcombine.high %v1552, %v1552
    %v1561 = vcombine.high %v1559, %v1559
    %v1562 = vunpack.i.l.s16 %v1552
    %v1563 = vunpack.i.h.s16 %v1552
    %v1564 = vunpack.i.l.s16 %v1559
    %v1565 = vunpack.i.h.s16 %v1559
    %v1566 = vunpack.i.l.s16 %v1560
    %v1567 = vunpack.i.h.s16 %v1560
    %v1568 = vunpack.i.l.s16 %v1561
    %v1569 = vunpack.i.h.s16 %v1561
    %v1570 = vpack.i.b16 %v1562, %v1562
    %v1571 = vpack.i.b16 %v1563, %v1563
    %v1572 = vpack.i.b16 %v1564, %v1564
    %v1573 = vpack.i.b16 %v1565, %v1565
    %v1574 = vpack.i.b16 %v1566, %v1566
    %v1575 = vpack.i.b16 %v1567, %v1567
    %v1576 = vpack.i.b16 %v1568, %v1568
    %v1577 = vpack.i.b16 %v1569, %v1569
    %v1579 = vunpack.c.l.s4 286326784
    %v1580 = vunpack.c.0.s8 %v1579
    %v1581 = vlaneseq
    %v1582 = vshrl.u32 %v1581, 7
    %v1583 = vsub.s32 %v1580, %v1582
    %v1584 = vrot.slane %v1570, %v1583
    %v1586 = vunpack.c.l.s4 286326784
    %v1587 = vunpack.c.0.s8 %v1586
    %v1588 = vlaneseq
    %v1589 = vshrl.u32 %v1588, 7
    %v1590 = vsub.s32 %v1587, %v1589
    %v1591 = vrot.slane %v1571, %v1590
    %v1593 = vunpack.c.l.s4 286326784
    %v1594 = vunpack.c.0.s8 %v1593
    %v1595 = vlaneseq
    %v1596 = vshrl.u32 %v1595, 7
    %v1597 = vsub.s32 %v1594, %v1596
    %v1598 = vrot.slane %v1572, %v1597
    %v1600 = vunpack.c.l.s4 286326784
    %v1601 = vunpack.c.0.s8 %v1600
    %v1602 = vlaneseq
    %v1603 = vshrl.u32 %v1602, 7
    %v1604 = vsub.s32 %v1601, %v1603
    %v1605 = vrot.slane %v1573, %v1604
    %v1607 = vunpack.c.l.s4 286326784
    %v1608 = vunpack.c.0.s8 %v1607
    %v1609 = vlaneseq
    %v1610 = vshrl.u32 %v1609, 7
    %v1611 = vsub.s32 %v1608, %v1610
    %v1612 = vrot.slane %v1574, %v1611
    %v1614 = vunpack.c.l.s4 286326784
    %v1615 = vunpack.c.0.s8 %v1614
    %v1616 = vlaneseq
    %v1617 = vshrl.u32 %v1616, 7
    %v1618 = vsub.s32 %v1615, %v1617
    %v1619 = vrot.slane %v1575, %v1618
    %v1621 = vunpack.c.l.s4 286326784
    %v1622 = vunpack.c.0.s8 %v1621
    %v1623 = vlaneseq
    %v1624 = vshrl.u32 %v1623, 7
    %v1625 = vsub.s32 %v1622, %v1624
    %v1626 = vrot.slane %v1576, %v1625
    %v1628 = vunpack.c.l.s4 286326784
    %v1629 = vunpack.c.0.s8 %v1628
    %v1630 = vlaneseq
    %v1631 = vshrl.u32 %v1630, 7
    %v1632 = vsub.s32 %v1629, %v1631
    %v1633 = vrot.slane %v1577, %v1632
    %vm1642 = vsmask.f32 7946
    %vm1643 = vmand %vm1395, %vm1642
    %v1644 = vld [vmem:[%s3] sm:$0x4]
    %v1645 = vsel %vm1643, %v1584, %v1644
    %1646 = vst [vmem:[%s3] sm:$0x4] %v1645
    %v1647 = vld [vmem:[%s3 + $0x4] sm:$0x4]
    %v1648 = vsel %vm1643, %v1591, %v1647
    %1649 = vst [vmem:[%s3 + $0x4] sm:$0x4] %v1648
    %v1650 = vld [vmem:[%s3 + $0x8] sm:$0x4]
    %v1651 = vsel %vm1643, %v1598, %v1650
    %1652 = vst [vmem:[%s3 + $0x8] sm:$0x4] %v1651
    %v1653 = vld [vmem:[%s3 + $0xc] sm:$0x4]
    %v1654 = vsel %vm1643, %v1605, %v1653
    %1655 = vst [vmem:[%s3 + $0xc] sm:$0x4] %v1654
    %v1656 = vld [vmem:[%s3 + $0x10] sm:$0x4]
    %v1657 = vsel %vm1643, %v1612, %v1656
    %1658 = vst [vmem:[%s3 + $0x10] sm:$0x4] %v1657
    %v1659 = vld [vmem:[%s3 + $0x14] sm:$0x4]
    %v1660 = vsel %vm1643, %v1619, %v1659
    %1661 = vst [vmem:[%s3 + $0x14] sm:$0x4] %v1660
    %v1662 = vld [vmem:[%s3 + $0x18] sm:$0x4]
    %v1663 = vsel %vm1643, %v1626, %v1662
    %1664 = vst [vmem:[%s3 + $0x18] sm:$0x4] %v1663
    %v1665 = vld [vmem:[%s3 + $0x1c] sm:$0x4]
    %v1666 = vsel %vm1643, %v1633, %v1665
    %1667 = vst [vmem:[%s3 + $0x1c] sm:$0x4] %v1666
    %v1668 = vld [vmem:[#allocation2] sm:$0xff]
    %s1669 = scalar_lea.vmem %s0, 72
    %v1670 = vld [vmem:[%s1669] sm:$0xff]
    %v1671 = vld [vmem:[%s1669 + $0x8] sm:$0xf]
    %v1672 = vpack.c.bf16 %v1668, %v1668
    %1673 = vmatprep.subr.bf16.mxu0 %v168
    %1674 = vmatpush1.bf16.msra.mxu0 %v167
    %1675 = vmatprep.subr.bf16.mxu0 %v165
    %1676 = vmatpush1.bf16.msra.mxu0 %v164
    %1677 = vmatprep.subr.bf16.mxu0 %v162
    %1678 = vmatpush1.bf16.msra.mxu0 %v161
    %1679 = vmatprep.subr.bf16.mxu0 %v159
    %1680 = vmatpush1.bf16.msra.mxu0 %v158
    %1681 = vmatprep.subr.bf16.mxu0 %v156
    %1682 = vmatpush1.bf16.msra.mxu0 %v155
    %1683 = vmatprep.subr.bf16.mxu0 %v153
    %1684 = vmatpush1.bf16.msra.mxu0 %v152
    %1685 = vmatprep.subr.bf16.mxu0 %v150
    %1686 = vmatpush1.bf16.msra.mxu0 %v149
    %1687 = vmatprep.subr.bf16.mxu0 %v147
    %1688 = vmatpush1.bf16.msra.mxu0 %v146
    %1689 = vmatprep.subr.bf16.mxu0 0
    %1690 = vmatpush2.bf16.msra.mxu0 0
    %1691 = vmatprep.subr.bf16.mxu0 0
    %1692 = vmatpush2.bf16.msra.mxu0 0
    %1693 = vmatprep.subr.bf16.mxu0 0
    %1694 = vmatpush2.bf16.msra.mxu0 0
    %1695 = vmatprep.subr.bf16.mxu0 0
    %1696 = vmatpush2.bf16.msra.mxu0 0
    %1697 = vmatprep.subr.bf16.mxu0 0
    %1698 = vmatpush2.bf16.msra.mxu0 0
    %1699 = vmatprep.subr.bf16.mxu0 0
    %1700 = vmatpush2.bf16.msra.mxu0 0
    %1701 = vmatprep.subr.bf16.mxu0 0
    %1702 = vmatpush2.bf16.msra.mxu0 0
    %1703 = vmatprep.subr.bf16.mxu0 0
    %1704 = vmatpush2.bf16.msra.mxu0 0
    %1705 = vmatprep.mubr.bf16.mxu0 0
    %1706 = vmatmul.mubr.bf16.gmra.mxu0 %v1672
    %v1707 = vpop.f32.mrf.mxu0
    %v1708 = vadd.f32 0.0, %v1707
    %v1709 = vpop.f32.mrf.mxu0
    %v1710 = vadd.f32 0.0, %v1709
    %v1711 = vpop.f32.mrf.mxu0
    %v1712 = vpop.f32.mrf.mxu0
    %1713 = vdwg.mxu0
    %1714 = vmatprep.subr.bf16.mxu0 0
    %1715 = vmatpush1.bf16.msra.mxu0 %v169
    %1716 = vmatprep.subr.bf16.mxu0 0
    %1717 = vmatpush1.bf16.msra.mxu0 %v166
    %1718 = vmatprep.subr.bf16.mxu0 0
    %1719 = vmatpush1.bf16.msra.mxu0 %v163
    %1720 = vmatprep.subr.bf16.mxu0 0
    %1721 = vmatpush1.bf16.msra.mxu0 %v160
    %1722 = vmatprep.subr.bf16.mxu0 0
    %1723 = vmatpush1.bf16.msra.mxu0 %v157
    %1724 = vmatprep.subr.bf16.mxu0 0
    %1725 = vmatpush1.bf16.msra.mxu0 %v154
    %1726 = vmatprep.subr.bf16.mxu0 0
    %1727 = vmatpush1.bf16.msra.mxu0 %v151
    %1728 = vmatprep.subr.bf16.mxu0 0
    %1729 = vmatpush1.bf16.msra.mxu0 %v148
    %1730 = vmatprep.subr.bf16.mxu0 0
    %1731 = vmatpush2.bf16.msra.mxu0 0
    %1732 = vmatprep.subr.bf16.mxu0 0
    %1733 = vmatpush2.bf16.msra.mxu0 0
    %1734 = vmatprep.subr.bf16.mxu0 0
    %1735 = vmatpush2.bf16.msra.mxu0 0
    %1736 = vmatprep.subr.bf16.mxu0 0
    %1737 = vmatpush2.bf16.msra.mxu0 0
    %1738 = vmatprep.subr.bf16.mxu0 0
    %1739 = vmatpush2.bf16.msra.mxu0 0
    %1740 = vmatprep.subr.bf16.mxu0 0
    %1741 = vmatpush2.bf16.msra.mxu0 0
    %1742 = vmatprep.subr.bf16.mxu0 0
    %1743 = vmatpush2.bf16.msra.mxu0 0
    %1744 = vmatprep.subr.bf16.mxu0 0
    %1745 = vmatpush2.bf16.msra.mxu0 0
    %1746 = vmatprep.mubr.bf16.mxu0 0
    %1747 = vmatmul.mubr.bf16.gmra.mxu0 %v1672
    %v1748 = vpop.f32.mrf.mxu0
    %v1749 = vadd.f32 0.0, %v1748
    %v1750 = vpop.f32.mrf.mxu0
    %v1751 = vpop.f32.mrf.mxu0
    %v1752 = vpop.f32.mrf.mxu0
    %1753 = vdwg.mxu0
    %v1754 = vunpack.c.l.bf16 %v1670
    %v1755 = vadd.f32 %v1754, %v1708
    %v1756 = vxor.u32 %v1755, 2147483648
    %v1757 = vmul.f32 %v1756, 1.442695
    %v1758 = vpow.pop %v1757
    %v1759 = vadd.f32 %v1758, 1.0
    %v1760 = vrcp.pop %v1759
    %v1761 = vmul.f32 1.0, %v1760
    %v1763 = vrot.slane %v1670, 4
    %v1765 = vunpack.c.l.bf16 %v1763
    %v1766 = vadd.f32 %v1765, %v1710
    %v1767 = vxor.u32 %v1766, 2147483648
    %v1768 = vmul.f32 %v1767, 1.442695
    %v1769 = vpow.pop %v1768
    %v1770 = vadd.f32 %v1769, 1.0
    %v1771 = vrcp.pop %v1770
    %v1772 = vmul.f32 1.0, %v1771
    %v1773 = vadd.f32 %v1749, %v60
    %v1774 = vmul.f32 %v1761, %v1773
    %v1775 = vunpack.c.l.bf16 %v1671
    %v1776 = vadd.f32 %v1775, %v1774
    %v1777 = vtanh.pop %v1776
    %v1778 = vsub.f32 %v1668, %v1777
    %v1779 = vmul.f32 %v1772, %v1778
    %v1780 = vadd.f32 %v1777, %v1779
    %1781 = vst [vmem:[#allocation2] sm:$0xff] %v1780
    %v1782 = vpack.c.bf16 %v1780, %v1780
    %v1785 = vunpack.c.l.s4 1966171168
    %v1786 = vunpack.c.0.s8 %v1785
    %v1787 = vlaneseq
    %v1788 = vshrl.u32 %v1787, 7
    %v1789 = vsub.s32 %v1786, %v1788
    %v1790 = vrot.slane %v1782, %v1789
    %v1791 = vcombine.high %v1790, %v1790
    %v1793 = vunpack.c.l.s4 1966171168
    %v1794 = vunpack.c.0.s8 %v1793
    %v1795 = vlaneseq
    %v1796 = vshrl.u32 %v1795, 7
    %v1797 = vsub.s32 %v1794, %v1796
    %v1798 = vrot.slane %v1790, %v1797
    %v1800 = vunpack.c.l.s4 1966171168
    %v1801 = vunpack.c.0.s8 %v1800
    %v1802 = vlaneseq
    %v1803 = vshrl.u32 %v1802, 7
    %v1804 = vsub.s32 %v1801, %v1803
    %v1805 = vrot.slane %v1791, %v1804
    %v1806 = vcombine.high %v1798, %v1798
    %v1807 = vcombine.high %v1805, %v1805
    %v1808 = vunpack.i.l.s16 %v1798
    %v1809 = vunpack.i.h.s16 %v1798
    %v1810 = vunpack.i.l.s16 %v1805
    %v1811 = vunpack.i.h.s16 %v1805
    %v1812 = vunpack.i.l.s16 %v1806
    %v1813 = vunpack.i.h.s16 %v1806
    %v1814 = vunpack.i.l.s16 %v1807
    %v1815 = vunpack.i.h.s16 %v1807
    %v1816 = vpack.i.b16 %v1808, %v1808
    %v1817 = vpack.i.b16 %v1809, %v1809
    %v1818 = vpack.i.b16 %v1810, %v1810
    %v1819 = vpack.i.b16 %v1811, %v1811
    %v1820 = vpack.i.b16 %v1812, %v1812
    %v1821 = vpack.i.b16 %v1813, %v1813
    %v1822 = vpack.i.b16 %v1814, %v1814
    %v1823 = vpack.i.b16 %v1815, %v1815
    %v1825 = vunpack.c.l.s4 286326784
    %v1826 = vunpack.c.0.s8 %v1825
    %v1827 = vlaneseq
    %v1828 = vshrl.u32 %v1827, 7
    %v1829 = vsub.s32 %v1826, %v1828
    %v1830 = vrot.slane %v1816, %v1829
    %v1832 = vunpack.c.l.s4 286326784
    %v1833 = vunpack.c.0.s8 %v1832
    %v1834 = vlaneseq
    %v1835 = vshrl.u32 %v1834, 7
    %v1836 = vsub.s32 %v1833, %v1835
    %v1837 = vrot.slane %v1817, %v1836
    %v1839 = vunpack.c.l.s4 286326784
    %v1840 = vunpack.c.0.s8 %v1839
    %v1841 = vlaneseq
    %v1842 = vshrl.u32 %v1841, 7
    %v1843 = vsub.s32 %v1840, %v1842
    %v1844 = vrot.slane %v1818, %v1843
    %v1846 = vunpack.c.l.s4 286326784
    %v1847 = vunpack.c.0.s8 %v1846
    %v1848 = vlaneseq
    %v1849 = vshrl.u32 %v1848, 7
    %v1850 = vsub.s32 %v1847, %v1849
    %v1851 = vrot.slane %v1819, %v1850
    %v1853 = vunpack.c.l.s4 286326784
    %v1854 = vunpack.c.0.s8 %v1853
    %v1855 = vlaneseq
    %v1856 = vshrl.u32 %v1855, 7
    %v1857 = vsub.s32 %v1854, %v1856
    %v1858 = vrot.slane %v1820, %v1857
    %v1860 = vunpack.c.l.s4 286326784
    %v1861 = vunpack.c.0.s8 %v1860
    %v1862 = vlaneseq
    %v1863 = vshrl.u32 %v1862, 7
    %v1864 = vsub.s32 %v1861, %v1863
    %v1865 = vrot.slane %v1821, %v1864
    %v1867 = vunpack.c.l.s4 286326784
    %v1868 = vunpack.c.0.s8 %v1867
    %v1869 = vlaneseq
    %v1870 = vshrl.u32 %v1869, 7
    %v1871 = vsub.s32 %v1868, %v1870
    %v1872 = vrot.slane %v1822, %v1871
    %v1874 = vunpack.c.l.s4 286326784
    %v1875 = vunpack.c.0.s8 %v1874
    %v1876 = vlaneseq
    %v1877 = vshrl.u32 %v1876, 7
    %v1878 = vsub.s32 %v1875, %v1877
    %v1879 = vrot.slane %v1823, %v1878
    %vm1888 = vcmask 1043459
    %vm1889 = vsmask.f32 3328
    %vm1890 = vmand %vm1888, %vm1889
    %v1891 = vld [vmem:[%s3] sm:$0x8]
    %v1892 = vsel %vm1890, %v1830, %v1891
    %1893 = vst [vmem:[%s3] sm:$0x8] %v1892
    %v1894 = vld [vmem:[%s3 + $0x4] sm:$0x8]
    %v1895 = vsel %vm1890, %v1837, %v1894
    %1896 = vst [vmem:[%s3 + $0x4] sm:$0x8] %v1895
    %v1897 = vld [vmem:[%s3 + $0x8] sm:$0x8]
    %v1898 = vsel %vm1890, %v1844, %v1897
    %1899 = vst [vmem:[%s3 + $0x8] sm:$0x8] %v1898
    %v1900 = vld [vmem:[%s3 + $0xc] sm:$0x8]
    %v1901 = vsel %vm1890, %v1851, %v1900
    %1902 = vst [vmem:[%s3 + $0xc] sm:$0x8] %v1901
    %v1903 = vld [vmem:[%s3 + $0x10] sm:$0x8]
    %v1904 = vsel %vm1890, %v1858, %v1903
    %1905 = vst [vmem:[%s3 + $0x10] sm:$0x8] %v1904
    %v1906 = vld [vmem:[%s3 + $0x14] sm:$0x8]
    %v1907 = vsel %vm1890, %v1865, %v1906
    %1908 = vst [vmem:[%s3 + $0x14] sm:$0x8] %v1907
    %v1909 = vld [vmem:[%s3 + $0x18] sm:$0x8]
    %v1910 = vsel %vm1890, %v1872, %v1909
    %1911 = vst [vmem:[%s3 + $0x18] sm:$0x8] %v1910
    %v1912 = vld [vmem:[%s3 + $0x1c] sm:$0x8]
    %v1913 = vsel %vm1890, %v1879, %v1912
    %1914 = vst [vmem:[%s3 + $0x1c] sm:$0x8] %v1913
    %v1915 = vld [vmem:[#allocation2] sm:$0xff]
    %s1916 = scalar_lea.vmem %s0, 84
    %v1917 = vld [vmem:[%s1916] sm:$0xff]
    %v1918 = vld [vmem:[%s1916 + $0x8] sm:$0xf]
    %v1919 = vpack.c.bf16 %v1915, %v1915
    %1920 = vmatprep.subr.bf16.mxu0 %v168
    %1921 = vmatpush1.bf16.msra.mxu0 %v167
    %1922 = vmatprep.subr.bf16.mxu0 %v165
    %1923 = vmatpush1.bf16.msra.mxu0 %v164
    %1924 = vmatprep.subr.bf16.mxu0 %v162
    %1925 = vmatpush1.bf16.msra.mxu0 %v161
    %1926 = vmatprep.subr.bf16.mxu0 %v159
    %1927 = vmatpush1.bf16.msra.mxu0 %v158
    %1928 = vmatprep.subr.bf16.mxu0 %v156
    %1929 = vmatpush1.bf16.msra.mxu0 %v155
    %1930 = vmatprep.subr.bf16.mxu0 %v153
    %1931 = vmatpush1.bf16.msra.mxu0 %v152
    %1932 = vmatprep.subr.bf16.mxu0 %v150
    %1933 = vmatpush1.bf16.msra.mxu0 %v149
    %1934 = vmatprep.subr.bf16.mxu0 %v147
    %1935 = vmatpush1.bf16.msra.mxu0 %v146
    %1936 = vmatprep.subr.bf16.mxu0 0
    %1937 = vmatpush2.bf16.msra.mxu0 0
    %1938 = vmatprep.subr.bf16.mxu0 0
    %1939 = vmatpush2.bf16.msra.mxu0 0
    %1940 = vmatprep.subr.bf16.mxu0 0
    %1941 = vmatpush2.bf16.msra.mxu0 0
    %1942 = vmatprep.subr.bf16.mxu0 0
    %1943 = vmatpush2.bf16.msra.mxu0 0
    %1944 = vmatprep.subr.bf16.mxu0 0
    %1945 = vmatpush2.bf16.msra.mxu0 0
    %1946 = vmatprep.subr.bf16.mxu0 0
    %1947 = vmatpush2.bf16.msra.mxu0 0
    %1948 = vmatprep.subr.bf16.mxu0 0
    %1949 = vmatpush2.bf16.msra.mxu0 0
    %1950 = vmatprep.subr.bf16.mxu0 0
    %1951 = vmatpush2.bf16.msra.mxu0 0
    %1952 = vmatprep.mubr.bf16.mxu0 0
    %1953 = vmatmul.mubr.bf16.gmra.mxu0 %v1919
    %v1954 = vpop.f32.mrf.mxu0
    %v1955 = vadd.f32 0.0, %v1954
    %v1956 = vpop.f32.mrf.mxu0
    %v1957 = vadd.f32 0.0, %v1956
    %v1958 = vpop.f32.mrf.mxu0
    %v1959 = vpop.f32.mrf.mxu0
    %1960 = vdwg.mxu0
    %1961 = vmatprep.subr.bf16.mxu0 0
    %1962 = vmatpush1.bf16.msra.mxu0 %v169
    %1963 = vmatprep.subr.bf16.mxu0 0
    %1964 = vmatpush1.bf16.msra.mxu0 %v166
    %1965 = vmatprep.subr.bf16.mxu0 0
    %1966 = vmatpush1.bf16.msra.mxu0 %v163
    %1967 = vmatprep.subr.bf16.mxu0 0
    %1968 = vmatpush1.bf16.msra.mxu0 %v160
    %1969 = vmatprep.subr.bf16.mxu0 0
    %1970 = vmatpush1.bf16.msra.mxu0 %v157
    %1971 = vmatprep.subr.bf16.mxu0 0
    %1972 = vmatpush1.bf16.msra.mxu0 %v154
    %1973 = vmatprep.subr.bf16.mxu0 0
    %1974 = vmatpush1.bf16.msra.mxu0 %v151
    %1975 = vmatprep.subr.bf16.mxu0 0
    %1976 = vmatpush1.bf16.msra.mxu0 %v148
    %1977 = vmatprep.subr.bf16.mxu0 0
    %1978 = vmatpush2.bf16.msra.mxu0 0
    %1979 = vmatprep.subr.bf16.mxu0 0
    %1980 = vmatpush2.bf16.msra.mxu0 0
    %1981 = vmatprep.subr.bf16.mxu0 0
    %1982 = vmatpush2.bf16.msra.mxu0 0
    %1983 = vmatprep.subr.bf16.mxu0 0
    %1984 = vmatpush2.bf16.msra.mxu0 0
    %1985 = vmatprep.subr.bf16.mxu0 0
    %1986 = vmatpush2.bf16.msra.mxu0 0
    %1987 = vmatprep.subr.bf16.mxu0 0
    %1988 = vmatpush2.bf16.msra.mxu0 0
    %1989 = vmatprep.subr.bf16.mxu0 0
    %1990 = vmatpush2.bf16.msra.mxu0 0
    %1991 = vmatprep.subr.bf16.mxu0 0
    %1992 = vmatpush2.bf16.msra.mxu0 0
    %1993 = vmatprep.mubr.bf16.mxu0 0
    %1994 = vmatmul.mubr.bf16.gmra.mxu0 %v1919
    %v1995 = vpop.f32.mrf.mxu0
    %v1996 = vadd.f32 0.0, %v1995
    %v1997 = vpop.f32.mrf.mxu0
    %v1998 = vpop.f32.mrf.mxu0
    %v1999 = vpop.f32.mrf.mxu0
    %2000 = vdwg.mxu0
    %v2001 = vunpack.c.l.bf16 %v1917
    %v2002 = vadd.f32 %v2001, %v1955
    %v2003 = vxor.u32 %v2002, 2147483648
    %v2004 = vmul.f32 %v2003, 1.442695
    %v2005 = vpow.pop %v2004
    %v2006 = vadd.f32 %v2005, 1.0
    %v2007 = vrcp.pop %v2006
    %v2008 = vmul.f32 1.0, %v2007
    %v2010 = vrot.slane %v1917, 4
    %v2012 = vunpack.c.l.bf16 %v2010
    %v2013 = vadd.f32 %v2012, %v1957
    %v2014 = vxor.u32 %v2013, 2147483648
    %v2015 = vmul.f32 %v2014, 1.442695
    %v2016 = vpow.pop %v2015
    %v2017 = vadd.f32 %v2016, 1.0
    %v2018 = vrcp.pop %v2017
    %v2019 = vmul.f32 1.0, %v2018
    %v2020 = vadd.f32 %v1996, %v60
    %v2021 = vmul.f32 %v2008, %v2020
    %v2022 = vunpack.c.l.bf16 %v1918
    %v2023 = vadd.f32 %v2022, %v2021
    %v2024 = vtanh.pop %v2023
    %v2025 = vsub.f32 %v1915, %v2024
    %v2026 = vmul.f32 %v2019, %v2025
    %v2027 = vadd.f32 %v2024, %v2026
    %2028 = vst [vmem:[#allocation2] sm:$0xff] %v2027
    %v2029 = vpack.c.bf16 %v2027, %v2027
    %v2032 = vunpack.c.l.s4 1966171168
    %v2033 = vunpack.c.0.s8 %v2032
    %v2034 = vlaneseq
    %v2035 = vshrl.u32 %v2034, 7
    %v2036 = vsub.s32 %v2033, %v2035
    %v2037 = vrot.slane %v2029, %v2036
    %v2038 = vcombine.high %v2037, %v2037
    %v2040 = vunpack.c.l.s4 1966171168
    %v2041 = vunpack.c.0.s8 %v2040
    %v2042 = vlaneseq
    %v2043 = vshrl.u32 %v2042, 7
    %v2044 = vsub.s32 %v2041, %v2043
    %v2045 = vrot.slane %v2037, %v2044
    %v2047 = vunpack.c.l.s4 1966171168
    %v2048 = vunpack.c.0.s8 %v2047
    %v2049 = vlaneseq
    %v2050 = vshrl.u32 %v2049, 7
    %v2051 = vsub.s32 %v2048, %v2050
    %v2052 = vrot.slane %v2038, %v2051
    %v2053 = vcombine.high %v2045, %v2045
    %v2054 = vcombine.high %v2052, %v2052
    %v2055 = vunpack.i.l.s16 %v2045
    %v2056 = vunpack.i.h.s16 %v2045
    %v2057 = vunpack.i.l.s16 %v2052
    %v2058 = vunpack.i.h.s16 %v2052
    %v2059 = vunpack.i.l.s16 %v2053
    %v2060 = vunpack.i.h.s16 %v2053
    %v2061 = vunpack.i.l.s16 %v2054
    %v2062 = vunpack.i.h.s16 %v2054
    %v2063 = vpack.i.b16 %v2055, %v2055
    %v2064 = vpack.i.b16 %v2056, %v2056
    %v2065 = vpack.i.b16 %v2057, %v2057
    %v2066 = vpack.i.b16 %v2058, %v2058
    %v2067 = vpack.i.b16 %v2059, %v2059
    %v2068 = vpack.i.b16 %v2060, %v2060
    %v2069 = vpack.i.b16 %v2061, %v2061
    %v2070 = vpack.i.b16 %v2062, %v2062
    %v2072 = vunpack.c.l.s4 286326784
    %v2073 = vunpack.c.0.s8 %v2072
    %v2074 = vlaneseq
    %v2075 = vshrl.u32 %v2074, 7
    %v2076 = vsub.s32 %v2073, %v2075
    %v2077 = vrot.slane %v2063, %v2076
    %v2079 = vunpack.c.l.s4 286326784
    %v2080 = vunpack.c.0.s8 %v2079
    %v2081 = vlaneseq
    %v2082 = vshrl.u32 %v2081, 7
    %v2083 = vsub.s32 %v2080, %v2082
    %v2084 = vrot.slane %v2064, %v2083
    %v2086 = vunpack.c.l.s4 286326784
    %v2087 = vunpack.c.0.s8 %v2086
    %v2088 = vlaneseq
    %v2089 = vshrl.u32 %v2088, 7
    %v2090 = vsub.s32 %v2087, %v2089
    %v2091 = vrot.slane %v2065, %v2090
    %v2093 = vunpack.c.l.s4 286326784
    %v2094 = vunpack.c.0.s8 %v2093
    %v2095 = vlaneseq
    %v2096 = vshrl.u32 %v2095, 7
    %v2097 = vsub.s32 %v2094, %v2096
    %v2098 = vrot.slane %v2066, %v2097
    %v2100 = vunpack.c.l.s4 286326784
    %v2101 = vunpack.c.0.s8 %v2100
    %v2102 = vlaneseq
    %v2103 = vshrl.u32 %v2102, 7
    %v2104 = vsub.s32 %v2101, %v2103
    %v2105 = vrot.slane %v2067, %v2104
    %v2107 = vunpack.c.l.s4 286326784
    %v2108 = vunpack.c.0.s8 %v2107
    %v2109 = vlaneseq
    %v2110 = vshrl.u32 %v2109, 7
    %v2111 = vsub.s32 %v2108, %v2110
    %v2112 = vrot.slane %v2068, %v2111
    %v2114 = vunpack.c.l.s4 286326784
    %v2115 = vunpack.c.0.s8 %v2114
    %v2116 = vlaneseq
    %v2117 = vshrl.u32 %v2116, 7
    %v2118 = vsub.s32 %v2115, %v2117
    %v2119 = vrot.slane %v2069, %v2118
    %v2121 = vunpack.c.l.s4 286326784
    %v2122 = vunpack.c.0.s8 %v2121
    %v2123 = vlaneseq
    %v2124 = vshrl.u32 %v2123, 7
    %v2125 = vsub.s32 %v2122, %v2124
    %v2126 = vrot.slane %v2070, %v2125
    %vm2135 = vsmask.f32 7950
    %vm2136 = vmand %vm1888, %vm2135
    %v2137 = vld [vmem:[%s3] sm:$0x8]
    %v2138 = vsel %vm2136, %v2077, %v2137
    %2139 = vst [vmem:[%s3] sm:$0x8] %v2138
    %v2140 = vld [vmem:[%s3 + $0x4] sm:$0x8]
    %v2141 = vsel %vm2136, %v2084, %v2140
    %2142 = vst [vmem:[%s3 + $0x4] sm:$0x8] %v2141
    %v2143 = vld [vmem:[%s3 + $0x8] sm:$0x8]
    %v2144 = vsel %vm2136, %v2091, %v2143
    %2145 = vst [vmem:[%s3 + $0x8] sm:$0x8] %v2144
    %v2146 = vld [vmem:[%s3 + $0xc] sm:$0x8]
    %v2147 = vsel %vm2136, %v2098, %v2146
    %2148 = vst [vmem:[%s3 + $0xc] sm:$0x8] %v2147
    %v2149 = vld [vmem:[%s3 + $0x10] sm:$0x8]
    %v2150 = vsel %vm2136, %v2105, %v2149
    %2151 = vst [vmem:[%s3 + $0x10] sm:$0x8] %v2150
    %v2152 = vld [vmem:[%s3 + $0x14] sm:$0x8]
    %v2153 = vsel %vm2136, %v2112, %v2152
    %2154 = vst [vmem:[%s3 + $0x14] sm:$0x8] %v2153
    %v2155 = vld [vmem:[%s3 + $0x18] sm:$0x8]
    %v2156 = vsel %vm2136, %v2119, %v2155
    %2157 = vst [vmem:[%s3 + $0x18] sm:$0x8] %v2156
    %v2158 = vld [vmem:[%s3 + $0x1c] sm:$0x8]
    %v2159 = vsel %vm2136, %v2126, %v2158
    %2160 = vst [vmem:[%s3 + $0x1c] sm:$0x8] %v2159
    // Predicated region
    $region18: #{encoder_rnn_forward.1} parent=1 // pred_check
      %p2161 = pneg %p18
    $region19: #{encoder_rnn_forward.1} parent=1 // pred_check_branch
      %2163 = sbr.rel (%p2161) target = $region21
    $region20: #{encoder_rnn_forward.1} parent=1 // pred_region
      %v2164 = vld [vmem:[#allocation2] sm:$0xff]
      %2165 = vst [vmem:[#allocation3] sm:$0xff] %v2164
    $region21: #{encoder_rnn_forward.1} parent=1 // pred_fallthru
      _
    // Predicated region
    $region22: #{encoder_rnn_forward.1} parent=1 // pred_check
      _
    $region23: #{encoder_rnn_forward.1} parent=1 // pred_check_branch
      %2167 = sbr.rel (0) target = $region25
    $region24: #{encoder_rnn_forward.1} parent=1 // pred_region
      _
    $region25: #{encoder_rnn_forward.1} parent=1 // pred_fallthru
      _
    // Predicated region
    $region26: #{encoder_rnn_forward.1} parent=1 // pred_check
      _
    $region27: #{encoder_rnn_forward.1} parent=1 // pred_check_branch
      %2169 = sbr.rel (0) target = $region29
    $region28: #{encoder_rnn_forward.1} parent=1 // pred_region
      %s2171 = ssub.s32 128, 128
      %2172 = vsyncadd [#allocation4], %s2171
      %s2174 = sshll.u32 [#allocation3], 4
      %s2175 = int_to_ptr.vmem [resolvable:$true] %s2174
      %2177 = dma.vmem_to_hbm [thread:$0]  %s2175, 128, %s4, [#allocation4]
    $region29: #{encoder_rnn_forward.1} parent=1 // pred_fallthru
      _
    // Predicated region
    $region30: #{encoder_rnn_forward.1} parent=1 // pred_check
      _
    $region31: #{encoder_rnn_forward.1} parent=1 // pred_check_branch
      %2179 = sbr.rel (0) target = $region33
    $region32: #{encoder_rnn_forward.1} parent=1 // pred_region
      _
    $region33: #{encoder_rnn_forward.1} parent=1 // pred_fallthru
      _
    // Predicated region
    $region34: #{encoder_rnn_forward.1} parent=1 // pred_check
      _
    $region35: #{encoder_rnn_forward.1} parent=1 // pred_check_branch
      %2181 = sbr.rel (0) target = $region37
    $region36: #{encoder_rnn_forward.1} parent=1 // pred_region
      %2182 = dma.done [#allocation4], 128
    $region37: #{encoder_rnn_forward.1} parent=1 // pred_fallthru
      _
    %2183 = vsyncpa [#allocation4], 1

</llo_original>
